<compile_context>
chip_gen: v5e
topology: v5e:2x2
jax: 0.10.0
libtpu: 0.0.40
codegen_flags: <defaults>
</compile_context>

<pallas_src>
import jax
import jax.numpy as jnp
from jax.experimental import pallas as pl
from jax.experimental.pallas import tpu as pltpu


def _upsample_conv_kernel(main_ref, halo0_ref, halo1_ref, w_ref, b_ref, o_ref):
    """Fused nearest-2x upsample + 3x3 conv (padding=1), subpixel form.

    main_ref  : (1, TH, W+2, C)   padded-input rows [t*TH, t*TH+TH)
    halo0_ref : (1, 1,  W+2, C)   padded-input row   t*TH+TH
    halo1_ref : (1, 1,  W+2, C)   padded-input row   t*TH+TH+1
    w_ref     : (2, 2, 2, 2C, Co) effective weights, indexed [i, j, dw],
                                  K dim ordered (dh, C)
    b_ref     : (1, 2*Co)         conv bias duplicated for the two j halves
    o_ref     : (1, TH, 2, W, 2*Co)  out[0, h, i, w, j*Co+co] = y[2h+i, 2w+j, co]
    """
    th = main_ref.shape[1]
    wp = main_ref.shape[2]
    c = main_ref.shape[3]
    w = wp - 2
    co2 = o_ref.shape[4]

    # Padded-input rows [t*TH, t*TH+TH+2), assembled once in VMEM.
    window = jnp.concatenate(
        [main_ref[0], halo0_ref[0], halo1_ref[0]], axis=0)        # (TH+2, W+2, C)
    # dh-fold: stack each row with its successor along channels -> K = 2C.
    win2 = jnp.concatenate([window[:-1], window[1:]], axis=-1)    # (TH+1, W+2, 2C)
    # The three column taps (offsets 0,1,2), flattened for 2-D MXU matmuls.
    cols = [win2[:, cc:cc + w, :].reshape((th + 1) * w, 2 * c)
            for cc in range(3)]                                   # ((TH+1)*W, 2C)

    bias = b_ref[...].astype(jnp.float32)                         # (1, 2*Co)
    for i in range(2):                      # output subpixel row
        halves = []
        for j in range(2):                  # output subpixel col
            acc = None
            for dw in range(2):             # column tap (row taps folded into K)
                lhs = cols[j + dw][i * w:i * w + th * w]          # (TH*W, 2C)
                rhs = w_ref[i, j, dw]                             # (2C, Co)
                part = jnp.dot(lhs, rhs, preferred_element_type=jnp.float32)
                acc = part if acc is None else acc + part
            halves.append(acc)
        out_i = jnp.concatenate(halves, axis=-1) + bias           # (TH*W, 2*Co)
        o_ref[0, :, i] = out_i.reshape(th, w, co2).astype(o_ref.dtype)


def _upsample_nearest_kernel(x_ref, o_ref):
    """Nearest-2x upsample, emitted directly in the final (free-reshape) layout."""
    v = x_ref[0]                                   # (TH, W, C)
    vv = jnp.concatenate([v, v], axis=-1)          # (TH, W, 2C): cols 2w, 2w+1
    o_ref[0, :, 0] = vv                            # output rows 2h
    o_ref[0, :, 1] = vv                            # output rows 2h+1


def _pick_row_tile(h, bytes_per_row, budget, min_tiles=2):
    """Largest divisor of `h` whose working set fits `budget`; prefer leaving
    >= `min_tiles` row-tiles (pipelining / megacore) unless that forces
    tiles below 8 rows."""
    budget = max(budget, bytes_per_row)
    fits = [d for d in range(1, h + 1)
            if h % d == 0 and d * bytes_per_row <= budget]
    if not fits:
        return 1
    cap = max(h // min_tiles, 1)
    capped = [d for d in fits if d <= cap and d >= min(8, h)]
    return max(capped) if capped else max(fits)


def upsample(x_nchw, conv_w=None, conv_b=None, *, use_conv=True,
             vmem_budget=20 * 1024 * 1024):
    """Forward pass of DDPM `Upsample`. x_nchw: (B, C, H, W). Returns NCHW."""
    B, C, H, W = x_nchw.shape
    dt = x_nchw.dtype
    ds = jnp.dtype(dt).itemsize
    x = jnp.transpose(x_nchw, (0, 2, 3, 1))                       # NHWC, native dtype

    cparams = pltpu.CompilerParams(
        dimension_semantics=("parallel", "parallel"),
        vmem_limit_bytes=32 * 1024 * 1024)

    if use_conv:
        Co, Ci, KH, KW = conv_w.shape
        assert (Ci, KH, KW) == (C, 3, 3)
        Wp = W + 2
        # One padded copy of the input (XLA fuses pad with the layout transpose).
        xp = jnp.pad(x, ((0, 0), (1, 1), (1, 1), (0, 0)))         # (B, H+2, W+2, C)

        # Subpixel decomposition: output (2h+i, 2w+j) reads padded rows h+i+dh,
        # cols w+j+dw (dh,dw in {0,1}); S selects which kernel taps collapse.
        S = jnp.array([[[1., 0., 0.], [0., 1., 1.]],
                       [[1., 1., 0.], [0., 0., 1.]]], dtype=jnp.float32)
        weff = jnp.einsum('pak,qbl,oikl->pqabio', S, S,
                          conv_w.astype(jnp.float32))             # (i,j,dh,dw,C,Co)
        # Fold dh into the contraction dim: (i, j, dw, 2C, Co), K ordered (dh, C).
        wf = jnp.transpose(weff, (0, 1, 3, 2, 4, 5)).reshape(
            2, 2, 2, 2 * C, Co).astype(dt)
        b2 = jnp.concatenate([conv_b, conv_b]).reshape(1, 2 * Co).astype(jnp.float32)

        # Per-row VMEM estimate (input blocks x2 buffers, window/win2 values,
        # 3 column-sliced copies, f32 accumulators, output block x2 buffers).
        per_row = (ds * Wp * C * 5 + ds * W * 2 * C * 3
                   + 4 * W * Co * 3 + ds * W * Co * 8)
        weight_bytes = wf.size * ds * 2 + b2.size * 4 * 2
        th = _pick_row_tile(H, per_row, vmem_budget - weight_bytes)
        grid = (B, H // th)

        out = pl.pallas_call(
            _upsample_conv_kernel,
            out_shape=jax.ShapeDtypeStruct((B, H, 2, W, 2 * Co), dt),
            grid_spec=pltpu.PrefetchScalarGridSpec(
                num_scalar_prefetch=0,
                grid=grid,
                in_specs=[
                    # main rows [t*th, t*th+th) of the padded input
                    pl.BlockSpec((1, th, Wp, C), lambda b, t: (b, t, 0, 0)),
                    # two single-row halos (same array, row t*th+th and +1)
                    pl.BlockSpec((1, 1, Wp, C),
                                 lambda b, t: (b, t * th + th, 0, 0)),
                    pl.BlockSpec((1, 1, Wp, C),
                                 lambda b, t: (b, t * th + th + 1, 0, 0)),
                    pl.BlockSpec((2, 2, 2, 2 * C, Co),
                                 lambda b, t: (0, 0, 0, 0, 0)),
                    pl.BlockSpec((1, 2 * Co), lambda b, t: (0, 0)),
                ],
                out_specs=pl.BlockSpec((1, th, 2, W, 2 * Co),
                                       lambda b, t: (b, t, 0, 0, 0)),
            ),
            compiler_params=cparams,
        )(xp, xp, xp, wf, b2)
        Cout = Co
    else:
        per_row = ds * W * C * 13
        th = _pick_row_tile(H, per_row, vmem_budget)
        grid = (B, H // th)

        out = pl.pallas_call(
            _upsample_nearest_kernel,
            out_shape=jax.ShapeDtypeStruct((B, H, 2, W, 2 * C), dt),
            grid_spec=pltpu.PrefetchScalarGridSpec(
                num_scalar_prefetch=0,
                grid=grid,
                in_specs=[pl.BlockSpec((1, th, W, C), lambda b, t: (b, t, 0, 0))],
                out_specs=pl.BlockSpec((1, th, 2, W, 2 * C),
                                       lambda b, t: (b, t, 0, 0, 0)),
            ),
            compiler_params=cparams,
        )(x)
        Cout = C

    # (B, H, 2, W, 2*Cout) -> (B, 2H, 2W, Cout) is a pure metadata reshape
    # (same row-major linearization); only the NCHW boundary transpose remains.
    y = out.reshape(B, 2 * H, 2 * W, Cout)
    return jnp.transpose(y, (0, 3, 1, 2))


def _reference(x_nchw, conv_w=None, conv_b=None, *, use_conv=True):
    """Pure-JAX reference mirroring the PyTorch Upsample forward."""
    up = jnp.repeat(jnp.repeat(x_nchw, 2, axis=2), 2, axis=3)     # nearest 2x
    if not use_conv:
        return up
    out = jax.lax.conv_general_dilated(
        up, conv_w, window_strides=(1, 1), padding=((1, 1), (1, 1)),
        dimension_numbers=('NCHW', 'OIHW', 'NCHW'),
        precision=jax.lax.Precision.HIGHEST)
    return out + conv_b[None, :, None, None]


if __name__ == "__main__":
    B, C, H, W = 2, 8, 16, 16
    key = jax.random.PRNGKey(0)
    k_x, k_w, k_b = jax.random.split(key, 3)
    x = jax.random.normal(k_x, (B, C, H, W), dtype=jnp.float32)
    w = 0.2 * jax.random.normal(k_w, (C, C, 3, 3), dtype=jnp.float32)
    b = 0.05 * jax.random.normal(k_b, (C,), dtype=jnp.float32)

    # use_conv=True path (nearest 2x upsample + 3x3 conv, fused).
    out = jax.block_until_ready(upsample(x, w, b, use_conv=True))
    ref = _reference(x, w, b, use_conv=True)
    assert out.shape == (B, C, 2 * H, 2 * W)
    err = float(jnp.max(jnp.abs(out - ref)))
    assert jnp.allclose(out, ref, atol=1e-3, rtol=1e-3), f"max abs err {err}"

    # use_conv=False path (pure nearest upsample, exact).
    out2 = jax.block_until_ready(upsample(x, use_conv=False))
    ref2 = _reference(x, use_conv=False)
    assert out2.shape == (B, C, 2 * H, 2 * W)
    assert jnp.array_equal(out2, ref2)

    print("KERNEL_OK")
</pallas_src>

<mosaic_0001>
module attributes {stable_mosaic.version = 11 : i64} {
  func.func @_upsample_conv_kernel(%arg0: i32, %arg1: i32, %arg2: memref<1x8x18x8xf32, #tpu.memory_space<vmem>>, %arg3: memref<1x1x18x8xf32, #tpu.memory_space<vmem>>, %arg4: memref<1x1x18x8xf32, #tpu.memory_space<vmem>>, %arg5: memref<2x2x2x16x8xf32, #tpu.memory_space<vmem>>, %arg6: memref<1x16xf32, #tpu.memory_space<vmem>>, %arg7: memref<1x8x2x16x16xf32, #tpu.memory_space<vmem>>) attributes {dimension_semantics = [#tpu.dimension_semantics<parallel>, #tpu.dimension_semantics<parallel>], iteration_bounds = array<i64: 2, 2>, scalar_prefetch = 0 : i64, scratch_operands = 0 : i64, tpu.core_type = #tpu.core_type<tc>, window_params = [{transform_indices = @transform_0, window_bounds = array<i64: 1, 8, 18, 8>}, {transform_indices = @transform_1, window_bounds = array<i64: 1, 1, 18, 8>}, {transform_indices = @transform_2, window_bounds = array<i64: 1, 1, 18, 8>}, {pipeline_mode = #tpu.pipeline_mode<synchronous>, transform_indices = @transform_3, window_bounds = array<i64: 2, 2, 2, 16, 8>}, {pipeline_mode = #tpu.pipeline_mode<synchronous>, transform_indices = @transform_4, window_bounds = array<i64: 1, 16>}, {transform_indices = @transform_5, window_bounds = array<i64: 1, 8, 2, 16, 16>}]} {
    %c0 = arith.constant 0 : index
    %c0_0 = arith.constant 0 : index
    %c0_1 = arith.constant 0 : index
    %c0_2 = arith.constant 0 : index
    %0 = vector.load %arg2[%c0, %c0_0, %c0_1, %c0_2] : memref<1x8x18x8xf32, #tpu.memory_space<vmem>>, vector<1x8x18x8xf32>
    %1 = vector.shape_cast %0 : vector<1x8x18x8xf32> to vector<8x18x8xf32>
    %c0_3 = arith.constant 0 : index
    %c0_4 = arith.constant 0 : index
    %c0_5 = arith.constant 0 : index
    %c0_6 = arith.constant 0 : index
    %2 = vector.load %arg3[%c0_3, %c0_4, %c0_5, %c0_6] : memref<1x1x18x8xf32, #tpu.memory_space<vmem>>, vector<1x1x18x8xf32>
    %3 = vector.shape_cast %2 : vector<1x1x18x8xf32> to vector<1x18x8xf32>
    %c0_7 = arith.constant 0 : index
    %c0_8 = arith.constant 0 : index
    %c0_9 = arith.constant 0 : index
    %c0_10 = arith.constant 0 : index
    %4 = vector.load %arg4[%c0_7, %c0_8, %c0_9, %c0_10] : memref<1x1x18x8xf32, #tpu.memory_space<vmem>>, vector<1x1x18x8xf32>
    %5 = vector.shape_cast %4 : vector<1x1x18x8xf32> to vector<1x18x8xf32>
    %6 = tpu.concatenate %1, %3, %5 in 0 : vector<8x18x8xf32>, vector<1x18x8xf32>, vector<1x18x8xf32> -> vector<10x18x8xf32>
    %7 = vector.extract_strided_slice %6 {offsets = [0, 0, 0], sizes = [9, 18, 8], strides = [1, 1, 1]} : vector<10x18x8xf32> to vector<9x18x8xf32>
    %8 = vector.extract_strided_slice %6 {offsets = [1, 0, 0], sizes = [9, 18, 8], strides = [1, 1, 1]} : vector<10x18x8xf32> to vector<9x18x8xf32>
    %9 = tpu.concatenate %7, %8 in 2 : vector<9x18x8xf32>, vector<9x18x8xf32> -> vector<9x18x16xf32>
    %10 = vector.extract_strided_slice %9 {offsets = [0, 0, 0], sizes = [9, 16, 16], strides = [1, 1, 1]} : vector<9x18x16xf32> to vector<9x16x16xf32>
    %11 = vector.shape_cast %10 : vector<9x16x16xf32> to vector<144x16xf32>
    %12 = vector.extract_strided_slice %9 {offsets = [0, 1, 0], sizes = [9, 16, 16], strides = [1, 1, 1]} : vector<9x18x16xf32> to vector<9x16x16xf32>
    %13 = vector.shape_cast %12 : vector<9x16x16xf32> to vector<144x16xf32>
    %14 = vector.extract_strided_slice %9 {offsets = [0, 2, 0], sizes = [9, 16, 16], strides = [1, 1, 1]} : vector<9x18x16xf32> to vector<9x16x16xf32>
    %15 = vector.shape_cast %14 : vector<9x16x16xf32> to vector<144x16xf32>
    %c0_11 = arith.constant 0 : index
    %c0_12 = arith.constant 0 : index
    %16 = vector.load %arg6[%c0_11, %c0_12] : memref<1x16xf32, #tpu.memory_space<vmem>>, vector<1x16xf32>
    %17 = vector.extract_strided_slice %11 {offsets = [0, 0], sizes = [128, 16], strides = [1, 1]} : vector<144x16xf32> to vector<128x16xf32>
    %c0_13 = arith.constant 0 : index
    %c0_14 = arith.constant 0 : index
    %c0_15 = arith.constant 0 : index
    %c0_16 = arith.constant 0 : index
    %c0_17 = arith.constant 0 : index
    %18 = vector.load %arg5[%c0_13, %c0_14, %c0_15, %c0_16, %c0_17] : memref<2x2x2x16x8xf32, #tpu.memory_space<vmem>>, vector<1x1x1x16x8xf32>
    %19 = vector.shape_cast %18 : vector<1x1x1x16x8xf32> to vector<16x8xf32>
    %cst = arith.constant dense<0.000000e+00> : vector<128x8xf32>
    %20 = tpu.matmul %17, %19, %cst {dimension_numbers = #tpu.dot_dimension_numbers<[1], [0], [0], [1], [0, 0, 1, 1], [], []>} : vector<128x16xf32>, vector<16x8xf32>, vector<128x8xf32> -> vector<128x8xf32>
    %21 = vector.extract_strided_slice %13 {offsets = [0, 0], sizes = [128, 16], strides = [1, 1]} : vector<144x16xf32> to vector<128x16xf32>
    %c0_18 = arith.constant 0 : index
    %c0_19 = arith.constant 0 : index
    %c1 = arith.constant 1 : index
    %c0_20 = arith.constant 0 : index
    %c0_21 = arith.constant 0 : index
    %22 = vector.load %arg5[%c0_18, %c0_19, %c1, %c0_20, %c0_21] : memref<2x2x2x16x8xf32, #tpu.memory_space<vmem>>, vector<1x1x1x16x8xf32>
    %23 = vector.shape_cast %22 : vector<1x1x1x16x8xf32> to vector<16x8xf32>
    %cst_22 = arith.constant dense<0.000000e+00> : vector<128x8xf32>
    %24 = tpu.matmul %21, %23, %cst_22 {dimension_numbers = #tpu.dot_dimension_numbers<[1], [0], [0], [1], [0, 0, 1, 1], [], []>} : vector<128x16xf32>, vector<16x8xf32>, vector<128x8xf32> -> vector<128x8xf32>
    %25 = arith.addf %20, %24 : vector<128x8xf32>
    %26 = vector.extract_strided_slice %13 {offsets = [0, 0], sizes = [128, 16], strides = [1, 1]} : vector<144x16xf32> to vector<128x16xf32>
    %c0_23 = arith.constant 0 : index
    %c1_24 = arith.constant 1 : index
    %c0_25 = arith.constant 0 : index
    %c0_26 = arith.constant 0 : index
    %c0_27 = arith.constant 0 : index
    %27 = vector.load %arg5[%c0_23, %c1_24, %c0_25, %c0_26, %c0_27] : memref<2x2x2x16x8xf32, #tpu.memory_space<vmem>>, vector<1x1x1x16x8xf32>
    %28 = vector.shape_cast %27 : vector<1x1x1x16x8xf32> to vector<16x8xf32>
    %cst_28 = arith.constant dense<0.000000e+00> : vector<128x8xf32>
    %29 = tpu.matmul %26, %28, %cst_28 {dimension_numbers = #tpu.dot_dimension_numbers<[1], [0], [0], [1], [0, 0, 1, 1], [], []>} : vector<128x16xf32>, vector<16x8xf32>, vector<128x8xf32> -> vector<128x8xf32>
    %30 = vector.extract_strided_slice %15 {offsets = [0, 0], sizes = [128, 16], strides = [1, 1]} : vector<144x16xf32> to vector<128x16xf32>
    %c0_29 = arith.constant 0 : index
    %c1_30 = arith.constant 1 : index
    %c1_31 = arith.constant 1 : index
    %c0_32 = arith.constant 0 : index
    %c0_33 = arith.constant 0 : index
    %31 = vector.load %arg5[%c0_29, %c1_30, %c1_31, %c0_32, %c0_33] : memref<2x2x2x16x8xf32, #tpu.memory_space<vmem>>, vector<1x1x1x16x8xf32>
    %32 = vector.shape_cast %31 : vector<1x1x1x16x8xf32> to vector<16x8xf32>
    %cst_34 = arith.constant dense<0.000000e+00> : vector<128x8xf32>
    %33 = tpu.matmul %30, %32, %cst_34 {dimension_numbers = #tpu.dot_dimension_numbers<[1], [0], [0], [1], [0, 0, 1, 1], [], []>} : vector<128x16xf32>, vector<16x8xf32>, vector<128x8xf32> -> vector<128x8xf32>
    %34 = arith.addf %29, %33 : vector<128x8xf32>
    %35 = tpu.concatenate %25, %34 in 1 : vector<128x8xf32>, vector<128x8xf32> -> vector<128x16xf32>
    %36 = vector.broadcast %16 : vector<1x16xf32> to vector<128x16xf32>
    %37 = arith.addf %35, %36 : vector<128x16xf32>
    %38 = vector.shape_cast %37 : vector<128x16xf32> to vector<8x16x16xf32>
    %c0_35 = arith.constant 0 : index
    %c0_36 = arith.constant 0 : index
    %c0_37 = arith.constant 0 : index
    %c0_38 = arith.constant 0 : index
    %c0_39 = arith.constant 0 : index
    %39 = vector.load %arg7[%c0_35, %c0_36, %c0_37, %c0_38, %c0_39] : memref<1x8x2x16x16xf32, #tpu.memory_space<vmem>>, vector<1x8x1x16x16xf32>
    %40 = vector.shape_cast %39 : vector<1x8x1x16x16xf32> to vector<8x16x16xf32>
    %41 = vector.shape_cast %38 : vector<8x16x16xf32> to vector<1x8x1x16x16xf32>
    tpu.vector_store %arg7[%c0_35, %c0_36, %c0_37, %c0_38, %c0_39], %41 {strides = array<i32>} : memref<1x8x2x16x16xf32, #tpu.memory_space<vmem>>, vector<1x8x1x16x16xf32>,
    %42 = vector.extract_strided_slice %11 {offsets = [16, 0], sizes = [128, 16], strides = [1, 1]} : vector<144x16xf32> to vector<128x16xf32>
    %c1_40 = arith.constant 1 : index
    %c0_41 = arith.constant 0 : index
    %c0_42 = arith.constant 0 : index
    %c0_43 = arith.constant 0 : index
    %c0_44 = arith.constant 0 : index
    %43 = vector.load %arg5[%c1_40, %c0_41, %c0_42, %c0_43, %c0_44] : memref<2x2x2x16x8xf32, #tpu.memory_space<vmem>>, vector<1x1x1x16x8xf32>
    %44 = vector.shape_cast %43 : vector<1x1x1x16x8xf32> to vector<16x8xf32>
    %cst_45 = arith.constant dense<0.000000e+00> : vector<128x8xf32>
    %45 = tpu.matmul %42, %44, %cst_45 {dimension_numbers = #tpu.dot_dimension_numbers<[1], [0], [0], [1], [0, 0, 1, 1], [], []>} : vector<128x16xf32>, vector<16x8xf32>, vector<128x8xf32> -> vector<128x8xf32>
    %46 = vector.extract_strided_slice %13 {offsets = [16, 0], sizes = [128, 16], strides = [1, 1]} : vector<144x16xf32> to vector<128x16xf32>
    %c1_46 = arith.constant 1 : index
    %c0_47 = arith.constant 0 : index
    %c1_48 = arith.constant 1 : index
    %c0_49 = arith.constant 0 : index
    %c0_50 = arith.constant 0 : index
    %47 = vector.load %arg5[%c1_46, %c0_47, %c1_48, %c0_49, %c0_50] : memref<2x2x2x16x8xf32, #tpu.memory_space<vmem>>, vector<1x1x1x16x8xf32>
    %48 = vector.shape_cast %47 : vector<1x1x1x16x8xf32> to vector<16x8xf32>
    %cst_51 = arith.constant dense<0.000000e+00> : vector<128x8xf32>
    %49 = tpu.matmul %46, %48, %cst_51 {dimension_numbers = #tpu.dot_dimension_numbers<[1], [0], [0], [1], [0, 0, 1, 1], [], []>} : vector<128x16xf32>, vector<16x8xf32>, vector<128x8xf32> -> vector<128x8xf32>
    %50 = arith.addf %45, %49 : vector<128x8xf32>
    %51 = vector.extract_strided_slice %13 {offsets = [16, 0], sizes = [128, 16], strides = [1, 1]} : vector<144x16xf32> to vector<128x16xf32>
    %c1_52 = arith.constant 1 : index
    %c1_53 = arith.constant 1 : index
    %c0_54 = arith.constant 0 : index
    %c0_55 = arith.constant 0 : index
    %c0_56 = arith.constant 0 : index
    %52 = vector.load %arg5[%c1_52, %c1_53, %c0_54, %c0_55, %c0_56] : memref<2x2x2x16x8xf32, #tpu.memory_space<vmem>>, vector<1x1x1x16x8xf32>
    %53 = vector.shape_cast %52 : vector<1x1x1x16x8xf32> to vector<16x8xf32>
    %cst_57 = arith.constant dense<0.000000e+00> : vector<128x8xf32>
    %54 = tpu.matmul %51, %53, %cst_57 {dimension_numbers = #tpu.dot_dimension_numbers<[1], [0], [0], [1], [0, 0, 1, 1], [], []>} : vector<128x16xf32>, vector<16x8xf32>, vector<128x8xf32> -> vector<128x8xf32>
    %55 = vector.extract_strided_slice %15 {offsets = [16, 0], sizes = [128, 16], strides = [1, 1]} : vector<144x16xf32> to vector<128x16xf32>
    %c1_58 = arith.constant 1 : index
    %c1_59 = arith.constant 1 : index
    %c1_60 = arith.constant 1 : index
    %c0_61 = arith.constant 0 : index
    %c0_62 = arith.constant 0 : index
    %56 = vector.load %arg5[%c1_58, %c1_59, %c1_60, %c0_61, %c0_62] : memref<2x2x2x16x8xf32, #tpu.memory_space<vmem>>, vector<1x1x1x16x8xf32>
    %57 = vector.shape_cast %56 : vector<1x1x1x16x8xf32> to vector<16x8xf32>
    %cst_63 = arith.constant dense<0.000000e+00> : vector<128x8xf32>
    %58 = tpu.matmul %55, %57, %cst_63 {dimension_numbers = #tpu.dot_dimension_numbers<[1], [0], [0], [1], [0, 0, 1, 1], [], []>} : vector<128x16xf32>, vector<16x8xf32>, vector<128x8xf32> -> vector<128x8xf32>
    %59 = arith.addf %54, %58 : vector<128x8xf32>
    %60 = tpu.concatenate %50, %59 in 1 : vector<128x8xf32>, vector<128x8xf32> -> vector<128x16xf32>
    %61 = vector.broadcast %16 : vector<1x16xf32> to vector<128x16xf32>
    %62 = arith.addf %60, %61 : vector<128x16xf32>
    %63 = vector.shape_cast %62 : vector<128x16xf32> to vector<8x16x16xf32>
    %c0_64 = arith.constant 0 : index
    %c0_65 = arith.constant 0 : index
    %c1_66 = arith.constant 1 : index
    %c0_67 = arith.constant 0 : index
    %c0_68 = arith.constant 0 : index
    %64 = vector.load %arg7[%c0_64, %c0_65, %c1_66, %c0_67, %c0_68] : memref<1x8x2x16x16xf32, #tpu.memory_space<vmem>>, vector<1x8x1x16x16xf32>
    %65 = vector.shape_cast %64 : vector<1x8x1x16x16xf32> to vector<8x16x16xf32>
    %66 = vector.shape_cast %63 : vector<8x16x16xf32> to vector<1x8x1x16x16xf32>
    tpu.vector_store %arg7[%c0_64, %c0_65, %c1_66, %c0_67, %c0_68], %66 {strides = array<i32>} : memref<1x8x2x16x16xf32, #tpu.memory_space<vmem>>, vector<1x8x1x16x16xf32>,
    return
  }
  func.func @transform_0(%arg0: i32, %arg1: i32) -> (i32, i32, i32, i32) {
    %c0_i32 = arith.constant 0 : i32
    %c0_i32_0 = arith.constant 0 : i32
    %c0_i32_1 = arith.constant 0 : i32
    return %arg0, %arg1, %c0_i32, %c0_i32_0 : i32, i32, i32, i32
  }
  func.func @transform_1(%arg0: i32, %arg1: i32) -> (i32, i32, i32, i32) {
    %c8_i32 = arith.constant 8 : i32
    %0 = arith.muli %arg1, %c8_i32 : i32
    %c8_i32_0 = arith.constant 8 : i32
    %1 = arith.addi %0, %c8_i32_0 : i32
    %c0_i32 = arith.constant 0 : i32
    %c0_i32_1 = arith.constant 0 : i32
    %c0_i32_2 = arith.constant 0 : i32
    return %arg0, %1, %c0_i32, %c0_i32_1 : i32, i32, i32, i32
  }
  func.func @transform_2(%arg0: i32, %arg1: i32) -> (i32, i32, i32, i32) {
    %c8_i32 = arith.constant 8 : i32
    %0 = arith.muli %arg1, %c8_i32 : i32
    %c8_i32_0 = arith.constant 8 : i32
    %1 = arith.addi %0, %c8_i32_0 : i32
    %c1_i32 = arith.constant 1 : i32
    %2 = arith.addi %1, %c1_i32 : i32
    %c0_i32 = arith.constant 0 : i32
    %c0_i32_1 = arith.constant 0 : i32
    %c0_i32_2 = arith.constant 0 : i32
    return %arg0, %2, %c0_i32, %c0_i32_1 : i32, i32, i32, i32
  }
  func.func @transform_3(%arg0: i32, %arg1: i32) -> (i32, i32, i32, i32, i32) {
    %c0_i32 = arith.constant 0 : i32
    %c0_i32_0 = arith.constant 0 : i32
    %c0_i32_1 = arith.constant 0 : i32
    %c0_i32_2 = arith.constant 0 : i32
    %c0_i32_3 = arith.constant 0 : i32
    %c0_i32_4 = arith.constant 0 : i32
    return %c0_i32, %c0_i32_0, %c0_i32_1, %c0_i32_2, %c0_i32_3 : i32, i32, i32, i32, i32
  }
  func.func @transform_4(%arg0: i32, %arg1: i32) -> (i32, i32) {
    %c0_i32 = arith.constant 0 : i32
    %c0_i32_0 = arith.constant 0 : i32
    %c0_i32_1 = arith.constant 0 : i32
    return %c0_i32, %c0_i32_0 : i32, i32
  }
  func.func @transform_5(%arg0: i32, %arg1: i32) -> (i32, i32, i32, i32, i32) {
    %c0_i32 = arith.constant 0 : i32
    %c0_i32_0 = arith.constant 0 : i32
    %c0_i32_1 = arith.constant 0 : i32
    %c0_i32_2 = arith.constant 0 : i32
    return %arg0, %arg1, %c0_i32, %c0_i32_0, %c0_i32_1 : i32, i32, i32, i32, i32
  }
}

</mosaic_0001>

<llo_original>
// kernel: tpu_custom_call.1
$region0: #{tpu_custom_call.1}
  #allocation0 [shape = 'u32[]', space=smem, size = 0x4, offset = 0x4, fixed_abs, tag = 'smem constant byte address 0x4 - core index']
  #allocation1 [shape = 'u32[72,128]{1,0:T(1,128)}', space=vmem, size = 0x9000, scoped, tag = 'internal scratch']
  %s0 = inlined_call_operand.vmem [shape: f32[2,18,18,8], index: 0, kind: input, shape index: {}]
  %s1 = inlined_call_operand.vmem [shape: f32[2,18,18,8], index: 1, kind: input, shape index: {}]
  %s2 = inlined_call_operand.vmem [shape: f32[2,18,18,8], index: 2, kind: input, shape index: {}]
  %s3 = inlined_call_operand.vmem [shape: f32[2,2,2,16,8], index: 3, kind: input, shape index: {}]
  %s4 = inlined_call_operand.vmem [shape: f32[1,16], index: 4, kind: input, shape index: {}]
  %s5 = inlined_call_operand.hbm [shape: f32[2,16,2,16,16], index: 5, kind: output, shape index: {}]
  %s6 = sld [smem:[#allocation0]]
  $region53: #{tpu_custom_call.1} parent=0
    _
  %s8 = ssub.s32 1, %s6
  %s9 = scalar_select 0, %s8, %s6
  $region1: #{tpu_custom_call.1} parent=0
    #allocation2 [shape = 'u8[262144]{0}', space=vmem, size = 0x40000, scoped, tag = 'output window, operand 0']
    #allocation3 [shape = 's32[2]{0}', space=sflag, size = 0x8, scoped, tag = 'scoped memory for tpu_custom_call.1']
    %10 = vsyncpa [#allocation3], 0
    %s11 = scalar_lea.sflag [#allocation3], 1
    %12 = vsyncpa %s11, 0
    loop: start=0, step=1, limit=6
    $region2: #{tpu_custom_call.1} parent=1 // loop_pre_header
      _
    $region3: #{tpu_custom_call.1} parent=1 // loop_header
      %s14 = sphi 0, %s18
      %p15 = scmp.ge.s32.totalorder %s14, 6
      %s21 = sphi 0, %s33
      %s22 = sphi 0, %s29
      %s23 = sphi 0, %s21
      %s24 = sphi 0, %s22
      %s25 = sphi 0, %s23
      %s26 = sphi 0, %s24
      %s38 = sphi 0, %s40
      %s41 = sphi 0, %s38
      %s42 = sphi 0, %s41
      %s58 = sphi 0, %s42
      %s70 = sphi 0, %s72
      %s73 = sphi 0, %s70
      %s74 = sphi 0, %s73
      %s90 = sphi 0, %s74
      %s102 = sphi 0, %s104
      %s105 = sphi 0, %s102
      %s106 = sphi 0, %s105
      %s122 = sphi 0, %s106
      %s126 = sphi 0, %s126
      %s128 = sphi 0, %s126
      %s129 = sphi 0, %s128
      %s143 = sphi 0, %s129
      %s147 = sphi 0, %s147
      %s149 = sphi 0, %s147
      %s150 = sphi 0, %s149
      %s164 = sphi 0, %s150
      %s172 = sphi 0, %s174
      %s175 = sphi 0, %s172
      %s176 = sphi 0, %s175
      %s192 = sphi 0, %s176
    $region4: #{tpu_custom_call.1} parent=1 // loop_header_branch
      %17 = sbr.rel (%p15) target = $region8
    $region5: #{tpu_custom_call.1} parent=1 // loop_body
      %s19 = ssub.s32 %s14, 1
      %s20 = ssub.s32 %s14, 2
      %s27 = sadd.s32 1, %s22
      %p28 = scmp.ge.s32.totalorder %s27, 2
      %s29 = scalar_select %p28, 0, %s27
      %s30 = sadd.s32 1, %s21
      %s31 = scalar_select %p28, %s30, %s21
      %p32 = scmp.ge.s32.totalorder %s31, 2
      %s33 = scalar_select %p32, 0, %s31
      %s34 = ssub.s32 %s21, %s33
      %s35 = ssub.s32 %s22, %s29
      %s36 = sor.u32 %s34, %s35
      %p37 = scmp.eq.s32.totalorder %s36, 0
      %s39 = sadd.s32 %s38, 1
      %s40 = scalar_select %p37, %s38, %s39
      %p43 = pneg %p37
      %p44 = scmp.eq.s32.totalorder %s14, 3
      %p45 = por %p43, %p44
      %p46 = scmp.ne.s32.totalorder %s38, %s41
      %p47 = scmp.eq.s32.totalorder %s14, 0
      %p48 = por %p46, %p47
      %p49 = scmp.ne.s32.totalorder %s38, %s41
      %p50 = scmp.eq.s32.totalorder %s19, 3
      %p51 = por %p49, %p50
      %p52 = scmp.ne.s32.totalorder %s41, %s42
      %p53 = scmp.eq.s32.totalorder %s19, 0
      %p54 = por %p52, %p53
      %p55 = scmp.ne.s32.totalorder %s41, %s42
      %p56 = scmp.eq.s32.totalorder %s20, 3
      %p57 = por %p55, %p56
      %p59 = scmp.ne.s32.totalorder %s42, %s58
      %p60 = scmp.eq.s32.totalorder %s20, 0
      %p61 = por %p59, %p60
      %s62 = smul.u32 %s22, 8
      %s63 = sadd.s32 %s62, 8
      %s64 = smul.u32 %s29, 8
      %s65 = sadd.s32 %s64, 8
      %s66 = ssub.s32 %s21, %s33
      %s67 = ssub.s32 %s63, %s65
      %s68 = sor.u32 %s66, %s67
      %p69 = scmp.eq.s32.totalorder %s68, 0
      %s71 = sadd.s32 %s70, 1
      %s72 = scalar_select %p69, %s70, %s71
      %p75 = pneg %p69
      %p76 = scmp.eq.s32.totalorder %s14, 3
      %p77 = por %p75, %p76
      %p78 = scmp.ne.s32.totalorder %s70, %s73
      %p79 = scmp.eq.s32.totalorder %s14, 0
      %p80 = por %p78, %p79
      %p81 = scmp.ne.s32.totalorder %s70, %s73
      %p82 = scmp.eq.s32.totalorder %s19, 3
      %p83 = por %p81, %p82
      %p84 = scmp.ne.s32.totalorder %s73, %s74
      %p85 = scmp.eq.s32.totalorder %s19, 0
      %p86 = por %p84, %p85
      %p87 = scmp.ne.s32.totalorder %s73, %s74
      %p88 = scmp.eq.s32.totalorder %s20, 3
      %p89 = por %p87, %p88
      %p91 = scmp.ne.s32.totalorder %s74, %s90
      %p92 = scmp.eq.s32.totalorder %s20, 0
      %p93 = por %p91, %p92
      %s94 = smul.u32 %s22, 8
      %s95 = sadd.s32 %s94, 9
      %s96 = smul.u32 %s29, 8
      %s97 = sadd.s32 %s96, 9
      %s98 = ssub.s32 %s21, %s33
      %s99 = ssub.s32 %s95, %s97
      %s100 = sor.u32 %s98, %s99
      %p101 = scmp.eq.s32.totalorder %s100, 0
      %s103 = sadd.s32 %s102, 1
      %s104 = scalar_select %p101, %s102, %s103
      %p107 = pneg %p101
      %p108 = scmp.eq.s32.totalorder %s14, 3
      %p109 = por %p107, %p108
      %p110 = scmp.ne.s32.totalorder %s102, %s105
      %p111 = scmp.eq.s32.totalorder %s14, 0
      %p112 = por %p110, %p111
      %p113 = scmp.ne.s32.totalorder %s102, %s105
      %p114 = scmp.eq.s32.totalorder %s19, 3
      %p115 = por %p113, %p114
      %p116 = scmp.ne.s32.totalorder %s105, %s106
      %p117 = scmp.eq.s32.totalorder %s19, 0
      %p118 = por %p116, %p117
      %p119 = scmp.ne.s32.totalorder %s105, %s106
      %p120 = scmp.eq.s32.totalorder %s20, 3
      %p121 = por %p119, %p120
      %p123 = scmp.ne.s32.totalorder %s106, %s122
      %p124 = scmp.eq.s32.totalorder %s20, 0
      %p125 = por %p123, %p124
      %s127 = sadd.s32 %s126, 1
      %p130 = scmp.eq.s32.totalorder %s14, 3
      %p131 = scmp.ne.s32.totalorder %s126, %s128
      %p132 = scmp.eq.s32.totalorder %s14, 0
      %p133 = por %p131, %p132
      %p134 = scmp.ne.s32.totalorder %s126, %s128
      %p135 = scmp.eq.s32.totalorder %s19, 3
      %p136 = por %p134, %p135
      %p137 = scmp.ne.s32.totalorder %s128, %s129
      %p138 = scmp.eq.s32.totalorder %s19, 0
      %p139 = por %p137, %p138
      %p140 = scmp.ne.s32.totalorder %s128, %s129
      %p141 = scmp.eq.s32.totalorder %s20, 3
      %p142 = por %p140, %p141
      %p144 = scmp.ne.s32.totalorder %s129, %s143
      %p145 = scmp.eq.s32.totalorder %s20, 0
      %p146 = por %p144, %p145
      %s148 = sadd.s32 %s147, 1
      %p151 = scmp.eq.s32.totalorder %s14, 3
      %p152 = scmp.ne.s32.totalorder %s147, %s149
      %p153 = scmp.eq.s32.totalorder %s14, 0
      %p154 = por %p152, %p153
      %p155 = scmp.ne.s32.totalorder %s147, %s149
      %p156 = scmp.eq.s32.totalorder %s19, 3
      %p157 = por %p155, %p156
      %p158 = scmp.ne.s32.totalorder %s149, %s150
      %p159 = scmp.eq.s32.totalorder %s19, 0
      %p160 = por %p158, %p159
      %p161 = scmp.ne.s32.totalorder %s149, %s150
      %p162 = scmp.eq.s32.totalorder %s20, 3
      %p163 = por %p161, %p162
      %p165 = scmp.ne.s32.totalorder %s150, %s164
      %p166 = scmp.eq.s32.totalorder %s20, 0
      %p167 = por %p165, %p166
      %s168 = ssub.s32 %s21, %s33
      %s169 = ssub.s32 %s22, %s29
      %s170 = sor.u32 %s168, %s169
      %p171 = scmp.eq.s32.totalorder %s170, 0
      %s173 = sadd.s32 %s172, 1
      %s174 = scalar_select %p171, %s172, %s173
      %p177 = pneg %p171
      %p178 = scmp.eq.s32.totalorder %s14, 3
      %p179 = por %p177, %p178
      %p180 = scmp.ne.s32.totalorder %s172, %s175
      %p181 = scmp.eq.s32.totalorder %s14, 0
      %p182 = por %p180, %p181
      %p183 = scmp.ne.s32.totalorder %s172, %s175
      %p184 = scmp.eq.s32.totalorder %s19, 3
      %p185 = por %p183, %p184
      %p186 = scmp.ne.s32.totalorder %s175, %s176
      %p187 = scmp.eq.s32.totalorder %s19, 0
      %p188 = por %p186, %p187
      %p189 = scmp.ne.s32.totalorder %s175, %s176
      %p190 = scmp.eq.s32.totalorder %s20, 3
      %p191 = por %p189, %p190
      %p193 = scmp.ne.s32.totalorder %s176, %s192
      %p194 = scmp.eq.s32.totalorder %s20, 0
      %p195 = por %p193, %p194
      %p196 = scmp.le.s32.totalorder 1, %s14
      %p197 = scmp.lt.s32.totalorder %s14, 5
      %p198 = pnand %p196, %p197
      %p199 = pneg %p198
      // Predicated region
      $region9: #{tpu_custom_call.1} parent=5 // pred_check
        _
      $region10: #{tpu_custom_call.1} parent=5 // pred_check_branch
        %201 = sbr.rel (%p198) target = $region12
      $region11: #{tpu_custom_call.1} parent=5 // pred_region
        %s202 = ssub.s32 %s14, 1
        // Predicated region
        $region13: #{tpu_custom_call.1} parent=11 // pred_check
          %p203 = pneg %p139
        $region14: #{tpu_custom_call.1} parent=11 // pred_check_branch
          %205 = sbr.rel (%p203) target = $region16
        $region15: #{tpu_custom_call.1} parent=11 // pred_region
          _
        $region16: #{tpu_custom_call.1} parent=11 // pred_fallthru
          _
        // Predicated region
        $region17: #{tpu_custom_call.1} parent=11 // pred_check
          %p206 = pneg %p160
        $region18: #{tpu_custom_call.1} parent=11 // pred_check_branch
          %208 = sbr.rel (%p206) target = $region20
        $region19: #{tpu_custom_call.1} parent=11 // pred_region
          _
        $region20: #{tpu_custom_call.1} parent=11 // pred_fallthru
          _
      $region12: #{tpu_custom_call.1} parent=5 // pred_fallthru
        _
      %p209 = scmp.lt.s32.totalorder %s14, 4
      // Predicated region
      $region21: #{tpu_custom_call.1} parent=5 // pred_check
        %p210 = pneg %p209
      $region22: #{tpu_custom_call.1} parent=5 // pred_check_branch
        %212 = sbr.rel (%p210) target = $region24
      $region23: #{tpu_custom_call.1} parent=5 // pred_region
        // Predicated region
        $region25: #{tpu_custom_call.1} parent=23 // pred_check
          %p213 = pneg %p48
        $region26: #{tpu_custom_call.1} parent=23 // pred_check_branch
          %215 = sbr.rel (%p213) target = $region28
        $region27: #{tpu_custom_call.1} parent=23 // pred_region
          %s216 = smul.u32 8, %s22
          %s217 = ssub.s32 18, %s216
          %p218 = scmp.lt.s32.totalorder %s217, 8
          %s219 = scalar_select %p218, %s217, 8
          %s220 = smul.u32 8, %s219
          %s221 = smul.u32 %s220, 3
          %p222 = scmp.lt.s32.totalorder %s21, 1
          %s223 = scalar_select %p222, %s21, 1
          %p224 = scmp.lt.s32.totalorder %s216, 17
          %s225 = scalar_select %p224, %s216, 17
          %s226 = smul.addr %s225, 3
          %s227 = smul.addr %s223, 54
          %s228 = sadd.s32 %s226, %s227
          %s229 = smul.addr %s228, 8
          %s230 = scalar_lea.vmem %s0, %s229
          %s231 = smul.u32 8, %s22
          %s232 = ssub.s32 18, %s231
          %p233 = scmp.lt.s32.totalorder %s232, 8
          %s234 = scalar_select %p233, %s232, 8
          %s235 = smul.u32 8, %s234
          %s236 = smul.u32 %s235, 3
        $region28: #{tpu_custom_call.1} parent=23 // pred_fallthru
          _
        // Predicated region
        $region29: #{tpu_custom_call.1} parent=23 // pred_check
          %p237 = pneg %p80
        $region30: #{tpu_custom_call.1} parent=23 // pred_check_branch
          %239 = sbr.rel (%p237) target = $region32
        $region31: #{tpu_custom_call.1} parent=23 // pred_region
          %s240 = smul.u32 %s22, 8
          %s241 = sadd.s32 %s240, 8
          %p242 = scmp.lt.s32.totalorder %s21, 1
          %s243 = scalar_select %p242, %s21, 1
          %p244 = scmp.lt.s32.totalorder %s241, 17
          %s245 = scalar_select %p244, %s241, 17
          %s246 = smul.addr %s245, 3
          %s247 = smul.addr %s243, 54
          %s248 = sadd.s32 %s246, %s247
          %s249 = smul.addr %s248, 8
          %s250 = scalar_lea.vmem %s1, %s249
          %s251 = smul.u32 %s22, 8
          %s252 = sadd.s32 %s251, 8
        $region32: #{tpu_custom_call.1} parent=23 // pred_fallthru
          _
        // Predicated region
        $region33: #{tpu_custom_call.1} parent=23 // pred_check
          %p253 = pneg %p112
        $region34: #{tpu_custom_call.1} parent=23 // pred_check_branch
          %255 = sbr.rel (%p253) target = $region36
        $region35: #{tpu_custom_call.1} parent=23 // pred_region
          %s256 = smul.u32 %s22, 8
          %s257 = sadd.s32 %s256, 9
          %p258 = scmp.lt.s32.totalorder %s21, 1
          %s259 = scalar_select %p258, %s21, 1
          %p260 = scmp.lt.s32.totalorder %s257, 17
          %s261 = scalar_select %p260, %s257, 17
          %s262 = smul.addr %s261, 3
          %s263 = smul.addr %s259, 54
          %s264 = sadd.s32 %s262, %s263
          %s265 = smul.addr %s264, 8
          %s266 = scalar_lea.vmem %s2, %s265
          %s267 = smul.u32 %s22, 8
          %s268 = sadd.s32 %s267, 9
        $region36: #{tpu_custom_call.1} parent=23 // pred_fallthru
          _
      $region24: #{tpu_custom_call.1} parent=5 // pred_fallthru
        _
      %p269 = scmp.le.s32.totalorder 1, %s14
      %p270 = scmp.lt.s32.totalorder %s14, 5
      %p271 = pnand %p269, %p270
      %p272 = pneg %p271
      // Predicated region
      $region37: #{tpu_custom_call.1} parent=5 // pred_check
        _
      $region38: #{tpu_custom_call.1} parent=5 // pred_check_branch
        %274 = sbr.rel (%p271) target = $region40
      $region39: #{tpu_custom_call.1} parent=5 // pred_region
        %s275 = ssub.s32 %s14, 1
        %s276 = smul.u32 8, %s24
        %s277 = ssub.s32 18, %s276
        %p278 = scmp.lt.s32.totalorder %s277, 8
        %s279 = scalar_select %p278, %s277, 8
        %s280 = smul.u32 8, %s279
        %s281 = smul.u32 %s280, 3
        %p282 = scmp.lt.s32.totalorder %s23, 1
        %s283 = scalar_select %p282, %s23, 1
        %p284 = scmp.lt.s32.totalorder %s276, 17
        %s285 = scalar_select %p284, %s276, 17
        %s286 = smul.addr %s285, 3
        %s287 = smul.addr %s283, 54
        %s288 = sadd.s32 %s286, %s287
        %s289 = smul.addr %s288, 8
        %s290 = scalar_lea.vmem %s0, %s289
        %p291 = pneg %p54
        %p292 = pneg %p51
        %s293 = smul.u32 %s24, 8
        %s294 = sadd.s32 %s293, 8
        %p295 = scmp.lt.s32.totalorder %s23, 1
        %s296 = scalar_select %p295, %s23, 1
        %p297 = scmp.lt.s32.totalorder %s294, 17
        %s298 = scalar_select %p297, %s294, 17
        %s299 = smul.addr %s298, 3
        %s300 = smul.addr %s296, 54
        %s301 = sadd.s32 %s299, %s300
        %s302 = smul.addr %s301, 8
        %s303 = scalar_lea.vmem %s1, %s302
        %p304 = pneg %p86
        %p305 = pneg %p83
        %s306 = smul.u32 %s24, 8
        %s307 = sadd.s32 %s306, 9
        %p308 = scmp.lt.s32.totalorder %s23, 1
        %s309 = scalar_select %p308, %s23, 1
        %p310 = scmp.lt.s32.totalorder %s307, 17
        %s311 = scalar_select %p310, %s307, 17
        %s312 = smul.addr %s311, 3
        %s313 = smul.addr %s309, 54
        %s314 = sadd.s32 %s312, %s313
        %s315 = smul.addr %s314, 8
        %s316 = scalar_lea.vmem %s2, %s315
        %p317 = pneg %p118
        %p318 = pneg %p115
        %p319 = pneg %p139
        %p320 = pneg %p136
        %p321 = pneg %p160
        %p322 = pneg %p157
        %p323 = pneg %p188
        %p324 = pneg %p185
        %s325 = sand.u32 %s175, 1
        %s326 = scalar_lea.sflag [#allocation3], %s325
        %s327 = sand.u32 %s175, 1
        %s328 = smul.addr %s327, 256
        %s329 = scalar_lea.vmem [#allocation2], %s328
        %s330 = smul.u32 8, %s24
        %s331 = ssub.s32 18, %s330
        %p332 = scmp.lt.s32.totalorder %s331, 8
        %s333 = scalar_select %p332, %s331, 8
        %s334 = smul.u32 8, %s333
        %s335 = smul.u32 %s334, 3
        %p336 = scmp.lt.s32.totalorder %s23, 1
        %s337 = scalar_select %p336, %s23, 1
        %p338 = scmp.lt.s32.totalorder %s330, 17
        %s339 = scalar_select %p338, %s330, 17
        %s340 = smul.addr %s339, 3
        %s341 = smul.addr %s337, 54
        %s342 = sadd.s32 %s340, %s341
        %s343 = smul.addr %s342, 8
        %s344 = scalar_lea.vmem %s0, %s343
        %s345 = smul.u32 8, %s24
        %s346 = ssub.s32 18, %s345
        %p347 = scmp.lt.s32.totalorder %s346, 8
        %s348 = scalar_select %p347, %s346, 8
        %s349 = smul.u32 8, %s348
        %s350 = smul.u32 %s349, 3
        %s351 = smul.u32 %s24, 8
        %s352 = sadd.s32 %s351, 8
        %p353 = scmp.lt.s32.totalorder %s23, 1
        %s354 = scalar_select %p353, %s23, 1
        %p355 = scmp.lt.s32.totalorder %s352, 17
        %s356 = scalar_select %p355, %s352, 17
        %s357 = smul.addr %s356, 3
        %s358 = smul.addr %s354, 54
        %s359 = sadd.s32 %s357, %s358
        %s360 = smul.addr %s359, 8
        %s361 = scalar_lea.vmem %s1, %s360
        %s362 = smul.u32 %s24, 8
        %s363 = sadd.s32 %s362, 8
        %s364 = smul.u32 %s24, 8
        %s365 = sadd.s32 %s364, 9
        %p366 = scmp.lt.s32.totalorder %s23, 1
        %s367 = scalar_select %p366, %s23, 1
        %p368 = scmp.lt.s32.totalorder %s365, 17
        %s369 = scalar_select %p368, %s365, 17
        %s370 = smul.addr %s369, 3
        %s371 = smul.addr %s367, 54
        %s372 = sadd.s32 %s370, %s371
        %s373 = smul.addr %s372, 8
        %s374 = scalar_lea.vmem %s2, %s373
        %s375 = smul.u32 %s24, 8
        %s376 = sadd.s32 %s375, 9
        %s377 = smul.u32 8, %s24
        %v378 = vld [vmem:[%s344] sm:$0xff]
        %v379 = vld [vmem:[%s344 + $0x8] sm:$0xff]
        %v380 = vld [vmem:[%s344 + $0x10] sm:$0x3]
        %v381 = vld [vmem:[%s344 + $0x18] sm:$0xff]
        %v382 = vld [vmem:[%s344 + $0x20] sm:$0xff]
        %v383 = vld [vmem:[%s344 + $0x28] sm:$0x3]
        %v384 = vld [vmem:[%s344 + $0x30] sm:$0xff]
        %v385 = vld [vmem:[%s344 + $0x38] sm:$0xff]
        %v386 = vld [vmem:[%s344 + $0x40] sm:$0x3]
        %v387 = vld [vmem:[%s344 + $0x48] sm:$0xff]
        %v388 = vld [vmem:[%s344 + $0x50] sm:$0xff]
        %v389 = vld [vmem:[%s344 + $0x58] sm:$0x3]
        %v390 = vld [vmem:[%s344 + $0x60] sm:$0xff]
        %v391 = vld [vmem:[%s344 + $0x68] sm:$0xff]
        %v392 = vld [vmem:[%s344 + $0x70] sm:$0x3]
        %v393 = vld [vmem:[%s344 + $0x78] sm:$0xff]
        %v394 = vld [vmem:[%s344 + $0x80] sm:$0xff]
        %v395 = vld [vmem:[%s344 + $0x88] sm:$0x3]
        %v396 = vld [vmem:[%s344 + $0x90] sm:$0xff]
        %v397 = vld [vmem:[%s344 + $0x98] sm:$0xff]
        %v398 = vld [vmem:[%s344 + $0xa0] sm:$0x3]
        %v399 = vld [vmem:[%s344 + $0xa8] sm:$0xff]
        %v400 = vld [vmem:[%s344 + $0xb0] sm:$0xff]
        %v401 = vld [vmem:[%s344 + $0xb8] sm:$0x3]
        %v402 = vld [vmem:[%s361] sm:$0xff]
        %v403 = vld [vmem:[%s361 + $0x8] sm:$0xff]
        %v404 = vld [vmem:[%s361 + $0x10] sm:$0x3]
        %v405 = vld [vmem:[%s374] sm:$0xff]
        %v406 = vld [vmem:[%s374 + $0x8] sm:$0xff]
        %v407 = vld [vmem:[%s374 + $0x10] sm:$0x3]
        %435 = vrot.lane.b32.xlu0 %v381, 8
        %v436 = vpop.permute.xlu0 %435
        %437 = vrot.lane.b32.xlu0 %v382, 8
        %v438 = vpop.permute.xlu0 %437
        %439 = vrot.lane.b32.xlu0 %v383, 8
        %v440 = vpop.permute.xlu0 %439
        %441 = vrot.lane.b32.xlu0 %v384, 8
        %v442 = vpop.permute.xlu0 %441
        %443 = vrot.lane.b32.xlu0 %v385, 8
        %v444 = vpop.permute.xlu0 %443
        %445 = vrot.lane.b32.xlu0 %v386, 8
        %v446 = vpop.permute.xlu0 %445
        %447 = vrot.lane.b32.xlu0 %v387, 8
        %v448 = vpop.permute.xlu0 %447
        %449 = vrot.lane.b32.xlu0 %v388, 8
        %v450 = vpop.permute.xlu0 %449
        %451 = vrot.lane.b32.xlu0 %v389, 8
        %v452 = vpop.permute.xlu0 %451
        %453 = vrot.lane.b32.xlu0 %v390, 8
        %v454 = vpop.permute.xlu0 %453
        %455 = vrot.lane.b32.xlu0 %v391, 8
        %v456 = vpop.permute.xlu0 %455
        %457 = vrot.lane.b32.xlu0 %v392, 8
        %v458 = vpop.permute.xlu0 %457
        %459 = vrot.lane.b32.xlu0 %v393, 8
        %v460 = vpop.permute.xlu0 %459
        %461 = vrot.lane.b32.xlu0 %v394, 8
        %v462 = vpop.permute.xlu0 %461
        %463 = vrot.lane.b32.xlu0 %v395, 8
        %v464 = vpop.permute.xlu0 %463
        %465 = vrot.lane.b32.xlu0 %v396, 8
        %v466 = vpop.permute.xlu0 %465
        %467 = vrot.lane.b32.xlu0 %v397, 8
        %v468 = vpop.permute.xlu0 %467
        %469 = vrot.lane.b32.xlu0 %v398, 8
        %v470 = vpop.permute.xlu0 %469
        %471 = vrot.lane.b32.xlu0 %v399, 8
        %v472 = vpop.permute.xlu0 %471
        %473 = vrot.lane.b32.xlu0 %v400, 8
        %v474 = vpop.permute.xlu0 %473
        %475 = vrot.lane.b32.xlu0 %v401, 8
        %v476 = vpop.permute.xlu0 %475
        %477 = vrot.lane.b32.xlu0 %v402, 8
        %v478 = vpop.permute.xlu0 %477
        %479 = vrot.lane.b32.xlu0 %v403, 8
        %v480 = vpop.permute.xlu0 %479
        %481 = vrot.lane.b32.xlu0 %v404, 8
        %v482 = vpop.permute.xlu0 %481
        %483 = vrot.lane.b32.xlu0 %v405, 8
        %v484 = vpop.permute.xlu0 %483
        %485 = vrot.lane.b32.xlu0 %v406, 8
        %v486 = vpop.permute.xlu0 %485
        %487 = vrot.lane.b32.xlu0 %v407, 8
        %v488 = vpop.permute.xlu0 %487
        %vm516 = vcmask 64512
        %v517 = vsel %vm516, %v378, %v436
        %v518 = vsel %vm516, %v379, %v438
        %v519 = vsel %vm516, %v380, %v440
        %v520 = vsel %vm516, %v381, %v442
        %v521 = vsel %vm516, %v382, %v444
        %v522 = vsel %vm516, %v383, %v446
        %v523 = vsel %vm516, %v384, %v448
        %v524 = vsel %vm516, %v385, %v450
        %v525 = vsel %vm516, %v386, %v452
        %v526 = vsel %vm516, %v387, %v454
        %v527 = vsel %vm516, %v388, %v456
        %v528 = vsel %vm516, %v389, %v458
        %v529 = vsel %vm516, %v390, %v460
        %v530 = vsel %vm516, %v391, %v462
        %v531 = vsel %vm516, %v392, %v464
        %v532 = vsel %vm516, %v393, %v466
        %v533 = vsel %vm516, %v394, %v468
        %v534 = vsel %vm516, %v395, %v470
        %v535 = vsel %vm516, %v396, %v472
        %v536 = vsel %vm516, %v397, %v474
        %v537 = vsel %vm516, %v398, %v476
        %v538 = vsel %vm516, %v399, %v478
        %v539 = vsel %vm516, %v400, %v480
        %v540 = vsel %vm516, %v401, %v482
        %v541 = vsel %vm516, %v402, %v484
        %v542 = vsel %vm516, %v403, %v486
        %v543 = vsel %vm516, %v404, %v488
        %vm571 = vcmask 1046528
        %v572 = vrot.slane %v517, 1
        %v573 = vrot.slane %v518, 1
        %v574 = vsel %vm571, %v572, %v573
        %v575 = vrot.slane %v519, 1
        %v576 = vsel %vm571, %v573, %v575
        %v577 = vrot.slane %v520, 1
        %v578 = vrot.slane %v521, 1
        %v579 = vsel %vm571, %v577, %v578
        %v580 = vrot.slane %v522, 1
        %v581 = vsel %vm571, %v578, %v580
        %v582 = vrot.slane %v523, 1
        %v583 = vrot.slane %v524, 1
        %v584 = vsel %vm571, %v582, %v583
        %v585 = vrot.slane %v525, 1
        %v586 = vsel %vm571, %v583, %v585
        %v587 = vrot.slane %v526, 1
        %v588 = vrot.slane %v527, 1
        %v589 = vsel %vm571, %v587, %v588
        %v590 = vrot.slane %v528, 1
        %v591 = vsel %vm571, %v588, %v590
        %v592 = vrot.slane %v529, 1
        %v593 = vrot.slane %v530, 1
        %v594 = vsel %vm571, %v592, %v593
        %v595 = vrot.slane %v531, 1
        %v596 = vsel %vm571, %v593, %v595
        %v597 = vrot.slane %v532, 1
        %v598 = vrot.slane %v533, 1
        %v599 = vsel %vm571, %v597, %v598
        %v600 = vrot.slane %v534, 1
        %v601 = vsel %vm571, %v598, %v600
        %v602 = vrot.slane %v535, 1
        %v603 = vrot.slane %v536, 1
        %v604 = vsel %vm571, %v602, %v603
        %v605 = vrot.slane %v537, 1
        %v606 = vsel %vm571, %v603, %v605
        %v607 = vrot.slane %v538, 1
        %v608 = vrot.slane %v539, 1
        %v609 = vsel %vm571, %v607, %v608
        %v610 = vrot.slane %v540, 1
        %v611 = vsel %vm571, %v608, %v610
        %v612 = vrot.slane %v541, 1
        %v613 = vrot.slane %v542, 1
        %v614 = vsel %vm571, %v612, %v613
        %v615 = vrot.slane %v543, 1
        %v616 = vsel %vm571, %v613, %v615
        %vm617 = vcmask 1045504
        %v618 = vrot.slane %v517, 2
        %v619 = vrot.slane %v518, 2
        %v620 = vsel %vm617, %v618, %v619
        %v621 = vrot.slane %v519, 2
        %v622 = vsel %vm617, %v619, %v621
        %v623 = vrot.slane %v520, 2
        %v624 = vrot.slane %v521, 2
        %v625 = vsel %vm617, %v623, %v624
        %v626 = vrot.slane %v522, 2
        %v627 = vsel %vm617, %v624, %v626
        %v628 = vrot.slane %v523, 2
        %v629 = vrot.slane %v524, 2
        %v630 = vsel %vm617, %v628, %v629
        %v631 = vrot.slane %v525, 2
        %v632 = vsel %vm617, %v629, %v631
        %v633 = vrot.slane %v526, 2
        %v634 = vrot.slane %v527, 2
        %v635 = vsel %vm617, %v633, %v634
        %v636 = vrot.slane %v528, 2
        %v637 = vsel %vm617, %v634, %v636
        %v638 = vrot.slane %v529, 2
        %v639 = vrot.slane %v530, 2
        %v640 = vsel %vm617, %v638, %v639
        %v641 = vrot.slane %v531, 2
        %v642 = vsel %vm617, %v639, %v641
        %v643 = vrot.slane %v532, 2
        %v644 = vrot.slane %v533, 2
        %v645 = vsel %vm617, %v643, %v644
        %v646 = vrot.slane %v534, 2
        %v647 = vsel %vm617, %v644, %v646
        %v648 = vrot.slane %v535, 2
        %v649 = vrot.slane %v536, 2
        %v650 = vsel %vm617, %v648, %v649
        %v651 = vrot.slane %v537, 2
        %v652 = vsel %vm617, %v649, %v651
        %v653 = vrot.slane %v538, 2
        %v654 = vrot.slane %v539, 2
        %v655 = vsel %vm617, %v653, %v654
        %v656 = vrot.slane %v540, 2
        %v657 = vsel %vm617, %v654, %v656
        %v658 = vrot.slane %v541, 2
        %v659 = vrot.slane %v542, 2
        %v660 = vsel %vm617, %v658, %v659
        %v661 = vrot.slane %v543, 2
        %v662 = vsel %vm617, %v659, %v661
        %v663 = vld [vmem:[%s4] sm:$0x1]
        %v664 = vld [vmem:[%s3] sm:$0xff]
        %v665 = vld [vmem:[%s3 + $0x8] sm:$0xff]
        %s666 = scalar_lea.vmem %s3, 16
        %v667 = vld [vmem:[%s666] sm:$0xff]
        %v668 = vld [vmem:[%s666 + $0x8] sm:$0xff]
        %vm669 = vcmask 130048
        %v670 = vsel %vm669, %v574, 0
        %v672 = vsel %vm669, %v576, 0
        %v674 = vsel %vm669, %v579, 0
        %v676 = vsel %vm669, %v581, 0
        %v678 = vsel %vm669, %v584, 0
        %v680 = vsel %vm669, %v586, 0
        %v682 = vsel %vm669, %v589, 0
        %v684 = vsel %vm669, %v591, 0
        %v686 = vsel %vm669, %v594, 0
        %v688 = vsel %vm669, %v596, 0
        %v690 = vsel %vm669, %v599, 0
        %v692 = vsel %vm669, %v601, 0
        %v694 = vsel %vm669, %v604, 0
        %v696 = vsel %vm669, %v606, 0
        %v698 = vsel %vm669, %v609, 0
        %v700 = vsel %vm669, %v611, 0
        %702 = vmatpush.msra.mxu0 0.0
        %703 = vmatpush.msra.mxu0 0.0
        %704 = vmatpush.msra.mxu0 0.0
        %705 = vmatpush.msra.mxu0 0.0
        %706 = vmatpush.msra.mxu0 0.0
        %707 = vmatpush.msra.mxu0 0.0
        %708 = vmatpush.msra.mxu0 0.0
        %709 = vmatpush.msra.mxu0 0.0
        %710 = vmatpush.msra.mxu0 0.0
        %711 = vmatpush.msra.mxu0 0.0
        %712 = vmatpush.msra.mxu0 0.0
        %713 = vmatpush.msra.mxu0 0.0
        %714 = vmatpush.msra.mxu0 0.0
        %715 = vmatpush.msra.mxu0 0.0
        %716 = vmatpush.msra.mxu0 %v668
        %717 = vmatpush.msra.mxu0 %v667
        %718 = vmatmul.f32.gmra.mxu0 %v670
        %v719 = vpop.f32.mrf.mxu0
        %v720 = vadd.f32 0.0, %v719
        %721 = vmatmul.f32.gmra.mxu0 %v672
        %v722 = vpop.f32.mrf.mxu0
        %v723 = vadd.f32 0.0, %v722
        %724 = vmatmul.f32.gmra.mxu0 %v674
        %v725 = vpop.f32.mrf.mxu0
        %v726 = vadd.f32 0.0, %v725
        %727 = vmatmul.f32.gmra.mxu0 %v676
        %v728 = vpop.f32.mrf.mxu0
        %v729 = vadd.f32 0.0, %v728
        %730 = vmatmul.f32.gmra.mxu0 %v678
        %v731 = vpop.f32.mrf.mxu0
        %v732 = vadd.f32 0.0, %v731
        %733 = vmatmul.f32.gmra.mxu0 %v680
        %v734 = vpop.f32.mrf.mxu0
        %v735 = vadd.f32 0.0, %v734
        %736 = vmatmul.f32.gmra.mxu0 %v682
        %v737 = vpop.f32.mrf.mxu0
        %v738 = vadd.f32 0.0, %v737
        %739 = vmatmul.f32.gmra.mxu0 %v684
        %v740 = vpop.f32.mrf.mxu0
        %v741 = vadd.f32 0.0, %v740
        %742 = vmatmul.f32.gmra.mxu0 %v686
        %v743 = vpop.f32.mrf.mxu0
        %v744 = vadd.f32 0.0, %v743
        %745 = vmatmul.f32.gmra.mxu0 %v688
        %v746 = vpop.f32.mrf.mxu0
        %v747 = vadd.f32 0.0, %v746
        %748 = vmatmul.f32.gmra.mxu0 %v690
        %v749 = vpop.f32.mrf.mxu0
        %v750 = vadd.f32 0.0, %v749
        %751 = vmatmul.f32.gmra.mxu0 %v692
        %v752 = vpop.f32.mrf.mxu0
        %v753 = vadd.f32 0.0, %v752
        %754 = vmatmul.f32.gmra.mxu0 %v694
        %v755 = vpop.f32.mrf.mxu0
        %v756 = vadd.f32 0.0, %v755
        %757 = vmatmul.f32.gmra.mxu0 %v696
        %v758 = vpop.f32.mrf.mxu0
        %v759 = vadd.f32 0.0, %v758
        %760 = vmatmul.f32.gmra.mxu0 %v698
        %v761 = vpop.f32.mrf.mxu0
        %v762 = vadd.f32 0.0, %v761
        %763 = vmatmul.f32.gmra.mxu0 %v700
        %v764 = vpop.f32.mrf.mxu0
        %v765 = vadd.f32 0.0, %v764
        %766 = vdwg.mxu0
        %v767 = vsel %vm669, %v517, 0
        %v769 = vsel %vm669, %v518, 0
        %v771 = vsel %vm669, %v520, 0
        %v773 = vsel %vm669, %v521, 0
        %v775 = vsel %vm669, %v523, 0
        %v777 = vsel %vm669, %v524, 0
        %v779 = vsel %vm669, %v526, 0
        %v781 = vsel %vm669, %v527, 0
        %v783 = vsel %vm669, %v529, 0
        %v785 = vsel %vm669, %v530, 0
        %v787 = vsel %vm669, %v532, 0
        %v789 = vsel %vm669, %v533, 0
        %v791 = vsel %vm669, %v535, 0
        %v793 = vsel %vm669, %v536, 0
        %v795 = vsel %vm669, %v538, 0
        %v797 = vsel %vm669, %v539, 0
        %799 = vmatpush.msra.mxu0 0.0
        %800 = vmatpush.msra.mxu0 0.0
        %801 = vmatpush.msra.mxu0 0.0
        %802 = vmatpush.msra.mxu0 0.0
        %803 = vmatpush.msra.mxu0 0.0
        %804 = vmatpush.msra.mxu0 0.0
        %805 = vmatpush.msra.mxu0 0.0
        %806 = vmatpush.msra.mxu0 0.0
        %807 = vmatpush.msra.mxu0 0.0
        %808 = vmatpush.msra.mxu0 0.0
        %809 = vmatpush.msra.mxu0 0.0
        %810 = vmatpush.msra.mxu0 0.0
        %811 = vmatpush.msra.mxu0 0.0
        %812 = vmatpush.msra.mxu0 0.0
        %813 = vmatpush.msra.mxu0 %v665
        %814 = vmatpush.msra.mxu0 %v664
        %815 = vmatmul.f32.gmra.mxu0 %v767
        %v816 = vpop.f32.mrf.mxu0
        %v817 = vadd.f32 %v720, %v816
        %818 = vmatmul.f32.gmra.mxu0 %v769
        %v819 = vpop.f32.mrf.mxu0
        %v820 = vadd.f32 %v723, %v819
        %821 = vmatmul.f32.gmra.mxu0 %v771
        %v822 = vpop.f32.mrf.mxu0
        %v823 = vadd.f32 %v726, %v822
        %824 = vmatmul.f32.gmra.mxu0 %v773
        %v825 = vpop.f32.mrf.mxu0
        %v826 = vadd.f32 %v729, %v825
        %827 = vmatmul.f32.gmra.mxu0 %v775
        %v828 = vpop.f32.mrf.mxu0
        %v829 = vadd.f32 %v732, %v828
        %830 = vmatmul.f32.gmra.mxu0 %v777
        %v831 = vpop.f32.mrf.mxu0
        %v832 = vadd.f32 %v735, %v831
        %833 = vmatmul.f32.gmra.mxu0 %v779
        %v834 = vpop.f32.mrf.mxu0
        %v835 = vadd.f32 %v738, %v834
        %836 = vmatmul.f32.gmra.mxu0 %v781
        %v837 = vpop.f32.mrf.mxu0
        %v838 = vadd.f32 %v741, %v837
        %839 = vmatmul.f32.gmra.mxu0 %v783
        %v840 = vpop.f32.mrf.mxu0
        %v841 = vadd.f32 %v744, %v840
        %842 = vmatmul.f32.gmra.mxu0 %v785
        %v843 = vpop.f32.mrf.mxu0
        %v844 = vadd.f32 %v747, %v843
        %845 = vmatmul.f32.gmra.mxu0 %v787
        %v846 = vpop.f32.mrf.mxu0
        %v847 = vadd.f32 %v750, %v846
        %848 = vmatmul.f32.gmra.mxu0 %v789
        %v849 = vpop.f32.mrf.mxu0
        %v850 = vadd.f32 %v753, %v849
        %851 = vmatmul.f32.gmra.mxu0 %v791
        %v852 = vpop.f32.mrf.mxu0
        %v853 = vadd.f32 %v756, %v852
        %854 = vmatmul.f32.gmra.mxu0 %v793
        %v855 = vpop.f32.mrf.mxu0
        %v856 = vadd.f32 %v759, %v855
        %857 = vmatmul.f32.gmra.mxu0 %v795
        %v858 = vpop.f32.mrf.mxu0
        %v859 = vadd.f32 %v762, %v858
        %860 = vmatmul.f32.gmra.mxu0 %v797
        %v861 = vpop.f32.mrf.mxu0
        %v862 = vadd.f32 %v765, %v861
        %863 = vdwg.mxu0
        %s864 = scalar_lea.vmem %s3, 32
        %v865 = vld [vmem:[%s864] sm:$0xff]
        %v866 = vld [vmem:[%s864 + $0x8] sm:$0xff]
        %s867 = scalar_lea.vmem %s3, 48
        %v868 = vld [vmem:[%s867] sm:$0xff]
        %v869 = vld [vmem:[%s867 + $0x8] sm:$0xff]
        %v870 = vsel %vm669, %v620, 0
        %v872 = vsel %vm669, %v622, 0
        %v874 = vsel %vm669, %v625, 0
        %v876 = vsel %vm669, %v627, 0
        %v878 = vsel %vm669, %v630, 0
        %v880 = vsel %vm669, %v632, 0
        %v882 = vsel %vm669, %v635, 0
        %v884 = vsel %vm669, %v637, 0
        %v886 = vsel %vm669, %v640, 0
        %v888 = vsel %vm669, %v642, 0
        %v890 = vsel %vm669, %v645, 0
        %v892 = vsel %vm669, %v647, 0
        %v894 = vsel %vm669, %v650, 0
        %v896 = vsel %vm669, %v652, 0
        %v898 = vsel %vm669, %v655, 0
        %v900 = vsel %vm669, %v657, 0
        %902 = vmatpush.msra.mxu0 0.0
        %903 = vmatpush.msra.mxu0 0.0
        %904 = vmatpush.msra.mxu0 0.0
        %905 = vmatpush.msra.mxu0 0.0
        %906 = vmatpush.msra.mxu0 0.0
        %907 = vmatpush.msra.mxu0 0.0
        %908 = vmatpush.msra.mxu0 0.0
        %909 = vmatpush.msra.mxu0 0.0
        %910 = vmatpush.msra.mxu0 0.0
        %911 = vmatpush.msra.mxu0 0.0
        %912 = vmatpush.msra.mxu0 0.0
        %913 = vmatpush.msra.mxu0 0.0
        %914 = vmatpush.msra.mxu0 0.0
        %915 = vmatpush.msra.mxu0 0.0
        %916 = vmatpush.msra.mxu0 %v869
        %917 = vmatpush.msra.mxu0 %v868
        %918 = vmatmul.f32.gmra.mxu0 %v870
        %v919 = vpop.f32.mrf.mxu0
        %v920 = vadd.f32 0.0, %v919
        %921 = vmatmul.f32.gmra.mxu0 %v872
        %v922 = vpop.f32.mrf.mxu0
        %v923 = vadd.f32 0.0, %v922
        %924 = vmatmul.f32.gmra.mxu0 %v874
        %v925 = vpop.f32.mrf.mxu0
        %v926 = vadd.f32 0.0, %v925
        %927 = vmatmul.f32.gmra.mxu0 %v876
        %v928 = vpop.f32.mrf.mxu0
        %v929 = vadd.f32 0.0, %v928
        %930 = vmatmul.f32.gmra.mxu0 %v878
        %v931 = vpop.f32.mrf.mxu0
        %v932 = vadd.f32 0.0, %v931
        %933 = vmatmul.f32.gmra.mxu0 %v880
        %v934 = vpop.f32.mrf.mxu0
        %v935 = vadd.f32 0.0, %v934
        %936 = vmatmul.f32.gmra.mxu0 %v882
        %v937 = vpop.f32.mrf.mxu0
        %v938 = vadd.f32 0.0, %v937
        %939 = vmatmul.f32.gmra.mxu0 %v884
        %v940 = vpop.f32.mrf.mxu0
        %v941 = vadd.f32 0.0, %v940
        %942 = vmatmul.f32.gmra.mxu0 %v886
        %v943 = vpop.f32.mrf.mxu0
        %v944 = vadd.f32 0.0, %v943
        %945 = vmatmul.f32.gmra.mxu0 %v888
        %v946 = vpop.f32.mrf.mxu0
        %v947 = vadd.f32 0.0, %v946
        %948 = vmatmul.f32.gmra.mxu0 %v890
        %v949 = vpop.f32.mrf.mxu0
        %v950 = vadd.f32 0.0, %v949
        %951 = vmatmul.f32.gmra.mxu0 %v892
        %v952 = vpop.f32.mrf.mxu0
        %v953 = vadd.f32 0.0, %v952
        %954 = vmatmul.f32.gmra.mxu0 %v894
        %v955 = vpop.f32.mrf.mxu0
        %v956 = vadd.f32 0.0, %v955
        %957 = vmatmul.f32.gmra.mxu0 %v896
        %v958 = vpop.f32.mrf.mxu0
        %v959 = vadd.f32 0.0, %v958
        %960 = vmatmul.f32.gmra.mxu0 %v898
        %v961 = vpop.f32.mrf.mxu0
        %v962 = vadd.f32 0.0, %v961
        %963 = vmatmul.f32.gmra.mxu0 %v900
        %v964 = vpop.f32.mrf.mxu0
        %v965 = vadd.f32 0.0, %v964
        %966 = vdwg.mxu0
        %967 = vmatpush.msra.mxu0 0.0
        %968 = vmatpush.msra.mxu0 0.0
        %969 = vmatpush.msra.mxu0 0.0
        %970 = vmatpush.msra.mxu0 0.0
        %971 = vmatpush.msra.mxu0 0.0
        %972 = vmatpush.msra.mxu0 0.0
        %973 = vmatpush.msra.mxu0 0.0
        %974 = vmatpush.msra.mxu0 0.0
        %975 = vmatpush.msra.mxu0 0.0
        %976 = vmatpush.msra.mxu0 0.0
        %977 = vmatpush.msra.mxu0 0.0
        %978 = vmatpush.msra.mxu0 0.0
        %979 = vmatpush.msra.mxu0 0.0
        %980 = vmatpush.msra.mxu0 0.0
        %981 = vmatpush.msra.mxu0 %v866
        %982 = vmatpush.msra.mxu0 %v865
        %983 = vmatmul.f32.gmra.mxu0 %v670
        %v984 = vpop.f32.mrf.mxu0
        %v985 = vadd.f32 %v920, %v984
        %986 = vmatmul.f32.gmra.mxu0 %v672
        %v987 = vpop.f32.mrf.mxu0
        %v988 = vadd.f32 %v923, %v987
        %989 = vmatmul.f32.gmra.mxu0 %v674
        %v990 = vpop.f32.mrf.mxu0
        %v991 = vadd.f32 %v926, %v990
        %992 = vmatmul.f32.gmra.mxu0 %v676
        %v993 = vpop.f32.mrf.mxu0
        %v994 = vadd.f32 %v929, %v993
        %995 = vmatmul.f32.gmra.mxu0 %v678
        %v996 = vpop.f32.mrf.mxu0
        %v997 = vadd.f32 %v932, %v996
        %998 = vmatmul.f32.gmra.mxu0 %v680
        %v999 = vpop.f32.mrf.mxu0
        %v1000 = vadd.f32 %v935, %v999
        %1001 = vmatmul.f32.gmra.mxu0 %v682
        %v1002 = vpop.f32.mrf.mxu0
        %v1003 = vadd.f32 %v938, %v1002
        %1004 = vmatmul.f32.gmra.mxu0 %v684
        %v1005 = vpop.f32.mrf.mxu0
        %v1006 = vadd.f32 %v941, %v1005
        %1007 = vmatmul.f32.gmra.mxu0 %v686
        %v1008 = vpop.f32.mrf.mxu0
        %v1009 = vadd.f32 %v944, %v1008
        %1010 = vmatmul.f32.gmra.mxu0 %v688
        %v1011 = vpop.f32.mrf.mxu0
        %v1012 = vadd.f32 %v947, %v1011
        %1013 = vmatmul.f32.gmra.mxu0 %v690
        %v1014 = vpop.f32.mrf.mxu0
        %v1015 = vadd.f32 %v950, %v1014
        %1016 = vmatmul.f32.gmra.mxu0 %v692
        %v1017 = vpop.f32.mrf.mxu0
        %v1018 = vadd.f32 %v953, %v1017
        %1019 = vmatmul.f32.gmra.mxu0 %v694
        %v1020 = vpop.f32.mrf.mxu0
        %v1021 = vadd.f32 %v956, %v1020
        %1022 = vmatmul.f32.gmra.mxu0 %v696
        %v1023 = vpop.f32.mrf.mxu0
        %v1024 = vadd.f32 %v959, %v1023
        %1025 = vmatmul.f32.gmra.mxu0 %v698
        %v1026 = vpop.f32.mrf.mxu0
        %v1027 = vadd.f32 %v962, %v1026
        %1028 = vmatmul.f32.gmra.mxu0 %v700
        %v1029 = vpop.f32.mrf.mxu0
        %v1030 = vadd.f32 %v965, %v1029
        %1031 = vdwg.mxu0
        %1048 = vrot.lane.b32.xlu0 %v985, 8
        %v1049 = vpop.permute.xlu0 %1048
        %1050 = vrot.lane.b32.xlu0 %v988, 8
        %v1051 = vpop.permute.xlu0 %1050
        %1052 = vrot.lane.b32.xlu0 %v991, 8
        %v1053 = vpop.permute.xlu0 %1052
        %1054 = vrot.lane.b32.xlu0 %v994, 8
        %v1055 = vpop.permute.xlu0 %1054
        %1056 = vrot.lane.b32.xlu0 %v997, 8
        %v1057 = vpop.permute.xlu0 %1056
        %1058 = vrot.lane.b32.xlu0 %v1000, 8
        %v1059 = vpop.permute.xlu0 %1058
        %1060 = vrot.lane.b32.xlu0 %v1003, 8
        %v1061 = vpop.permute.xlu0 %1060
        %1062 = vrot.lane.b32.xlu0 %v1006, 8
        %v1063 = vpop.permute.xlu0 %1062
        %1064 = vrot.lane.b32.xlu0 %v1009, 8
        %v1065 = vpop.permute.xlu0 %1064
        %1066 = vrot.lane.b32.xlu0 %v1012, 8
        %v1067 = vpop.permute.xlu0 %1066
        %1068 = vrot.lane.b32.xlu0 %v1015, 8
        %v1069 = vpop.permute.xlu0 %1068
        %1070 = vrot.lane.b32.xlu0 %v1018, 8
        %v1071 = vpop.permute.xlu0 %1070
        %1072 = vrot.lane.b32.xlu0 %v1021, 8
        %v1073 = vpop.permute.xlu0 %1072
        %1074 = vrot.lane.b32.xlu0 %v1024, 8
        %v1075 = vpop.permute.xlu0 %1074
        %1076 = vrot.lane.b32.xlu0 %v1027, 8
        %v1077 = vpop.permute.xlu0 %1076
        %1078 = vrot.lane.b32.xlu0 %v1030, 8
        %v1079 = vpop.permute.xlu0 %1078
        %v1096 = vsel %vm516, %v817, %v1049
        %v1097 = vsel %vm516, %v820, %v1051
        %v1098 = vsel %vm516, %v823, %v1053
        %v1099 = vsel %vm516, %v826, %v1055
        %v1100 = vsel %vm516, %v829, %v1057
        %v1101 = vsel %vm516, %v832, %v1059
        %v1102 = vsel %vm516, %v835, %v1061
        %v1103 = vsel %vm516, %v838, %v1063
        %v1104 = vsel %vm516, %v841, %v1065
        %v1105 = vsel %vm516, %v844, %v1067
        %v1106 = vsel %vm516, %v847, %v1069
        %v1107 = vsel %vm516, %v850, %v1071
        %v1108 = vsel %vm516, %v853, %v1073
        %v1109 = vsel %vm516, %v856, %v1075
        %v1110 = vsel %vm516, %v859, %v1077
        %v1111 = vsel %vm516, %v862, %v1079
        %v1113 = vperm.slane %v663, 0
        %v1115 = vadd.f32 %v1096, %v1113
        %v1116 = vadd.f32 %v1097, %v1113
        %v1117 = vadd.f32 %v1098, %v1113
        %v1118 = vadd.f32 %v1099, %v1113
        %v1119 = vadd.f32 %v1100, %v1113
        %v1120 = vadd.f32 %v1101, %v1113
        %v1121 = vadd.f32 %v1102, %v1113
        %v1122 = vadd.f32 %v1103, %v1113
        %v1123 = vadd.f32 %v1104, %v1113
        %v1124 = vadd.f32 %v1105, %v1113
        %v1125 = vadd.f32 %v1106, %v1113
        %v1126 = vadd.f32 %v1107, %v1113
        %v1127 = vadd.f32 %v1108, %v1113
        %v1128 = vadd.f32 %v1109, %v1113
        %v1129 = vadd.f32 %v1110, %v1113
        %v1130 = vadd.f32 %v1111, %v1113
        %1131 = vst.msk [vmem:[%s329] sm:$0xff] %vm669, %v1115
        %1132 = vst.msk [vmem:[%s329 + $0x8] sm:$0xff] %vm669, %v1116
        %1133 = vst.msk [vmem:[%s329 + $0x20] sm:$0xff] %vm669, %v1117
        %1134 = vst.msk [vmem:[%s329 + $0x28] sm:$0xff] %vm669, %v1118
        %1135 = vst.msk [vmem:[%s329 + $0x40] sm:$0xff] %vm669, %v1119
        %1136 = vst.msk [vmem:[%s329 + $0x48] sm:$0xff] %vm669, %v1120
        %1137 = vst.msk [vmem:[%s329 + $0x60] sm:$0xff] %vm669, %v1121
        %1138 = vst.msk [vmem:[%s329 + $0x68] sm:$0xff] %vm669, %v1122
        %1139 = vst.msk [vmem:[%s329 + $0x80] sm:$0xff] %vm669, %v1123
        %1140 = vst.msk [vmem:[%s329 + $0x88] sm:$0xff] %vm669, %v1124
        %1141 = vst.msk [vmem:[%s329 + $0xa0] sm:$0xff] %vm669, %v1125
        %1142 = vst.msk [vmem:[%s329 + $0xa8] sm:$0xff] %vm669, %v1126
        %1143 = vst.msk [vmem:[%s329 + $0xc0] sm:$0xff] %vm669, %v1127
        %1144 = vst.msk [vmem:[%s329 + $0xc8] sm:$0xff] %vm669, %v1128
        %1145 = vst.msk [vmem:[%s329 + $0xe0] sm:$0xff] %vm669, %v1129
        %1146 = vst.msk [vmem:[%s329 + $0xe8] sm:$0xff] %vm669, %v1130
        %s1147 = scalar_lea.vmem %s3, 64
        %v1148 = vld [vmem:[%s1147] sm:$0xff]
        %v1149 = vld [vmem:[%s1147 + $0x8] sm:$0xff]
        %s1150 = scalar_lea.vmem %s3, 80
        %v1151 = vld [vmem:[%s1150] sm:$0xff]
        %v1152 = vld [vmem:[%s1150 + $0x8] sm:$0xff]
        %v1153 = vsel %vm669, %v614, 0
        %v1155 = vsel %vm669, %v616, 0
        %1157 = vmatpush.msra.mxu0 0.0
        %1158 = vmatpush.msra.mxu0 0.0
        %1159 = vmatpush.msra.mxu0 0.0
        %1160 = vmatpush.msra.mxu0 0.0
        %1161 = vmatpush.msra.mxu0 0.0
        %1162 = vmatpush.msra.mxu0 0.0
        %1163 = vmatpush.msra.mxu0 0.0
        %1164 = vmatpush.msra.mxu0 0.0
        %1165 = vmatpush.msra.mxu0 0.0
        %1166 = vmatpush.msra.mxu0 0.0
        %1167 = vmatpush.msra.mxu0 0.0
        %1168 = vmatpush.msra.mxu0 0.0
        %1169 = vmatpush.msra.mxu0 0.0
        %1170 = vmatpush.msra.mxu0 0.0
        %1171 = vmatpush.msra.mxu0 %v1152
        %1172 = vmatpush.msra.mxu0 %v1151
        %1173 = vmatmul.f32.gmra.mxu0 %v674
        %v1174 = vpop.f32.mrf.mxu0
        %v1175 = vadd.f32 0.0, %v1174
        %1176 = vmatmul.f32.gmra.mxu0 %v676
        %v1177 = vpop.f32.mrf.mxu0
        %v1178 = vadd.f32 0.0, %v1177
        %1179 = vmatmul.f32.gmra.mxu0 %v678
        %v1180 = vpop.f32.mrf.mxu0
        %v1181 = vadd.f32 0.0, %v1180
        %1182 = vmatmul.f32.gmra.mxu0 %v680
        %v1183 = vpop.f32.mrf.mxu0
        %v1184 = vadd.f32 0.0, %v1183
        %1185 = vmatmul.f32.gmra.mxu0 %v682
        %v1186 = vpop.f32.mrf.mxu0
        %v1187 = vadd.f32 0.0, %v1186
        %1188 = vmatmul.f32.gmra.mxu0 %v684
        %v1189 = vpop.f32.mrf.mxu0
        %v1190 = vadd.f32 0.0, %v1189
        %1191 = vmatmul.f32.gmra.mxu0 %v686
        %v1192 = vpop.f32.mrf.mxu0
        %v1193 = vadd.f32 0.0, %v1192
        %1194 = vmatmul.f32.gmra.mxu0 %v688
        %v1195 = vpop.f32.mrf.mxu0
        %v1196 = vadd.f32 0.0, %v1195
        %1197 = vmatmul.f32.gmra.mxu0 %v690
        %v1198 = vpop.f32.mrf.mxu0
        %v1199 = vadd.f32 0.0, %v1198
        %1200 = vmatmul.f32.gmra.mxu0 %v692
        %v1201 = vpop.f32.mrf.mxu0
        %v1202 = vadd.f32 0.0, %v1201
        %1203 = vmatmul.f32.gmra.mxu0 %v694
        %v1204 = vpop.f32.mrf.mxu0
        %v1205 = vadd.f32 0.0, %v1204
        %1206 = vmatmul.f32.gmra.mxu0 %v696
        %v1207 = vpop.f32.mrf.mxu0
        %v1208 = vadd.f32 0.0, %v1207
        %1209 = vmatmul.f32.gmra.mxu0 %v698
        %v1210 = vpop.f32.mrf.mxu0
        %v1211 = vadd.f32 0.0, %v1210
        %1212 = vmatmul.f32.gmra.mxu0 %v700
        %v1213 = vpop.f32.mrf.mxu0
        %v1214 = vadd.f32 0.0, %v1213
        %1215 = vmatmul.f32.gmra.mxu0 %v1153
        %v1216 = vpop.f32.mrf.mxu0
        %v1217 = vadd.f32 0.0, %v1216
        %1218 = vmatmul.f32.gmra.mxu0 %v1155
        %v1219 = vpop.f32.mrf.mxu0
        %v1220 = vadd.f32 0.0, %v1219
        %1221 = vdwg.mxu0
        %v1222 = vsel %vm669, %v541, 0
        %v1224 = vsel %vm669, %v542, 0
        %1226 = vmatpush.msra.mxu0 0.0
        %1227 = vmatpush.msra.mxu0 0.0
        %1228 = vmatpush.msra.mxu0 0.0
        %1229 = vmatpush.msra.mxu0 0.0
        %1230 = vmatpush.msra.mxu0 0.0
        %1231 = vmatpush.msra.mxu0 0.0
        %1232 = vmatpush.msra.mxu0 0.0
        %1233 = vmatpush.msra.mxu0 0.0
        %1234 = vmatpush.msra.mxu0 0.0
        %1235 = vmatpush.msra.mxu0 0.0
        %1236 = vmatpush.msra.mxu0 0.0
        %1237 = vmatpush.msra.mxu0 0.0
        %1238 = vmatpush.msra.mxu0 0.0
        %1239 = vmatpush.msra.mxu0 0.0
        %1240 = vmatpush.msra.mxu0 %v1149
        %1241 = vmatpush.msra.mxu0 %v1148
        %1242 = vmatmul.f32.gmra.mxu0 %v771
        %v1243 = vpop.f32.mrf.mxu0
        %v1244 = vadd.f32 %v1175, %v1243
        %1245 = vmatmul.f32.gmra.mxu0 %v773
        %v1246 = vpop.f32.mrf.mxu0
        %v1247 = vadd.f32 %v1178, %v1246
        %1248 = vmatmul.f32.gmra.mxu0 %v775
        %v1249 = vpop.f32.mrf.mxu0
        %v1250 = vadd.f32 %v1181, %v1249
        %1251 = vmatmul.f32.gmra.mxu0 %v777
        %v1252 = vpop.f32.mrf.mxu0
        %v1253 = vadd.f32 %v1184, %v1252
        %1254 = vmatmul.f32.gmra.mxu0 %v779
        %v1255 = vpop.f32.mrf.mxu0
        %v1256 = vadd.f32 %v1187, %v1255
        %1257 = vmatmul.f32.gmra.mxu0 %v781
        %v1258 = vpop.f32.mrf.mxu0
        %v1259 = vadd.f32 %v1190, %v1258
        %1260 = vmatmul.f32.gmra.mxu0 %v783
        %v1261 = vpop.f32.mrf.mxu0
        %v1262 = vadd.f32 %v1193, %v1261
        %1263 = vmatmul.f32.gmra.mxu0 %v785
        %v1264 = vpop.f32.mrf.mxu0
        %v1265 = vadd.f32 %v1196, %v1264
        %1266 = vmatmul.f32.gmra.mxu0 %v787
        %v1267 = vpop.f32.mrf.mxu0
        %v1268 = vadd.f32 %v1199, %v1267
        %1269 = vmatmul.f32.gmra.mxu0 %v789
        %v1270 = vpop.f32.mrf.mxu0
        %v1271 = vadd.f32 %v1202, %v1270
        %1272 = vmatmul.f32.gmra.mxu0 %v791
        %v1273 = vpop.f32.mrf.mxu0
        %v1274 = vadd.f32 %v1205, %v1273
        %1275 = vmatmul.f32.gmra.mxu0 %v793
        %v1276 = vpop.f32.mrf.mxu0
        %v1277 = vadd.f32 %v1208, %v1276
        %1278 = vmatmul.f32.gmra.mxu0 %v795
        %v1279 = vpop.f32.mrf.mxu0
        %v1280 = vadd.f32 %v1211, %v1279
        %1281 = vmatmul.f32.gmra.mxu0 %v797
        %v1282 = vpop.f32.mrf.mxu0
        %v1283 = vadd.f32 %v1214, %v1282
        %1284 = vmatmul.f32.gmra.mxu0 %v1222
        %v1285 = vpop.f32.mrf.mxu0
        %v1286 = vadd.f32 %v1217, %v1285
        %1287 = vmatmul.f32.gmra.mxu0 %v1224
        %v1288 = vpop.f32.mrf.mxu0
        %v1289 = vadd.f32 %v1220, %v1288
        %1290 = vdwg.mxu0
        %s1291 = scalar_lea.vmem %s3, 96
        %v1292 = vld [vmem:[%s1291] sm:$0xff]
        %v1293 = vld [vmem:[%s1291 + $0x8] sm:$0xff]
        %s1294 = scalar_lea.vmem %s3, 112
        %v1295 = vld [vmem:[%s1294] sm:$0xff]
        %v1296 = vld [vmem:[%s1294 + $0x8] sm:$0xff]
        %v1297 = vsel %vm669, %v660, 0
        %v1299 = vsel %vm669, %v662, 0
        %1301 = vmatpush.msra.mxu0 0.0
        %1302 = vmatpush.msra.mxu0 0.0
        %1303 = vmatpush.msra.mxu0 0.0
        %1304 = vmatpush.msra.mxu0 0.0
        %1305 = vmatpush.msra.mxu0 0.0
        %1306 = vmatpush.msra.mxu0 0.0
        %1307 = vmatpush.msra.mxu0 0.0
        %1308 = vmatpush.msra.mxu0 0.0
        %1309 = vmatpush.msra.mxu0 0.0
        %1310 = vmatpush.msra.mxu0 0.0
        %1311 = vmatpush.msra.mxu0 0.0
        %1312 = vmatpush.msra.mxu0 0.0
        %1313 = vmatpush.msra.mxu0 0.0
        %1314 = vmatpush.msra.mxu0 0.0
        %1315 = vmatpush.msra.mxu0 %v1296
        %1316 = vmatpush.msra.mxu0 %v1295
        %1317 = vmatmul.f32.gmra.mxu0 %v874
        %v1318 = vpop.f32.mrf.mxu0
        %v1319 = vadd.f32 0.0, %v1318
        %1320 = vmatmul.f32.gmra.mxu0 %v876
        %v1321 = vpop.f32.mrf.mxu0
        %v1322 = vadd.f32 0.0, %v1321
        %1323 = vmatmul.f32.gmra.mxu0 %v878
        %v1324 = vpop.f32.mrf.mxu0
        %v1325 = vadd.f32 0.0, %v1324
        %1326 = vmatmul.f32.gmra.mxu0 %v880
        %v1327 = vpop.f32.mrf.mxu0
        %v1328 = vadd.f32 0.0, %v1327
        %1329 = vmatmul.f32.gmra.mxu0 %v882
        %v1330 = vpop.f32.mrf.mxu0
        %v1331 = vadd.f32 0.0, %v1330
        %1332 = vmatmul.f32.gmra.mxu0 %v884
        %v1333 = vpop.f32.mrf.mxu0
        %v1334 = vadd.f32 0.0, %v1333
        %1335 = vmatmul.f32.gmra.mxu0 %v886
        %v1336 = vpop.f32.mrf.mxu0
        %v1337 = vadd.f32 0.0, %v1336
        %1338 = vmatmul.f32.gmra.mxu0 %v888
        %v1339 = vpop.f32.mrf.mxu0
        %v1340 = vadd.f32 0.0, %v1339
        %1341 = vmatmul.f32.gmra.mxu0 %v890
        %v1342 = vpop.f32.mrf.mxu0
        %v1343 = vadd.f32 0.0, %v1342
        %1344 = vmatmul.f32.gmra.mxu0 %v892
        %v1345 = vpop.f32.mrf.mxu0
        %v1346 = vadd.f32 0.0, %v1345
        %1347 = vmatmul.f32.gmra.mxu0 %v894
        %v1348 = vpop.f32.mrf.mxu0
        %v1349 = vadd.f32 0.0, %v1348
        %1350 = vmatmul.f32.gmra.mxu0 %v896
        %v1351 = vpop.f32.mrf.mxu0
        %v1352 = vadd.f32 0.0, %v1351
        %1353 = vmatmul.f32.gmra.mxu0 %v898
        %v1354 = vpop.f32.mrf.mxu0
        %v1355 = vadd.f32 0.0, %v1354
        %1356 = vmatmul.f32.gmra.mxu0 %v900
        %v1357 = vpop.f32.mrf.mxu0
        %v1358 = vadd.f32 0.0, %v1357
        %1359 = vmatmul.f32.gmra.mxu0 %v1297
        %v1360 = vpop.f32.mrf.mxu0
        %v1361 = vadd.f32 0.0, %v1360
        %1362 = vmatmul.f32.gmra.mxu0 %v1299
        %v1363 = vpop.f32.mrf.mxu0
        %v1364 = vadd.f32 0.0, %v1363
        %1365 = vdwg.mxu0
        %1366 = vmatpush.msra.mxu0 0.0
        %1367 = vmatpush.msra.mxu0 0.0
        %1368 = vmatpush.msra.mxu0 0.0
        %1369 = vmatpush.msra.mxu0 0.0
        %1370 = vmatpush.msra.mxu0 0.0
        %1371 = vmatpush.msra.mxu0 0.0
        %1372 = vmatpush.msra.mxu0 0.0
        %1373 = vmatpush.msra.mxu0 0.0
        %1374 = vmatpush.msra.mxu0 0.0
        %1375 = vmatpush.msra.mxu0 0.0
        %1376 = vmatpush.msra.mxu0 0.0
        %1377 = vmatpush.msra.mxu0 0.0
        %1378 = vmatpush.msra.mxu0 0.0
        %1379 = vmatpush.msra.mxu0 0.0
        %1380 = vmatpush.msra.mxu0 %v1293
        %1381 = vmatpush.msra.mxu0 %v1292
        %1382 = vmatmul.f32.gmra.mxu0 %v674
        %v1383 = vpop.f32.mrf.mxu0
        %v1384 = vadd.f32 %v1319, %v1383
        %1385 = vmatmul.f32.gmra.mxu0 %v676
        %v1386 = vpop.f32.mrf.mxu0
        %v1387 = vadd.f32 %v1322, %v1386
        %1388 = vmatmul.f32.gmra.mxu0 %v678
        %v1389 = vpop.f32.mrf.mxu0
        %v1390 = vadd.f32 %v1325, %v1389
        %1391 = vmatmul.f32.gmra.mxu0 %v680
        %v1392 = vpop.f32.mrf.mxu0
        %v1393 = vadd.f32 %v1328, %v1392
        %1394 = vmatmul.f32.gmra.mxu0 %v682
        %v1395 = vpop.f32.mrf.mxu0
        %v1396 = vadd.f32 %v1331, %v1395
        %1397 = vmatmul.f32.gmra.mxu0 %v684
        %v1398 = vpop.f32.mrf.mxu0
        %v1399 = vadd.f32 %v1334, %v1398
        %1400 = vmatmul.f32.gmra.mxu0 %v686
        %v1401 = vpop.f32.mrf.mxu0
        %v1402 = vadd.f32 %v1337, %v1401
        %1403 = vmatmul.f32.gmra.mxu0 %v688
        %v1404 = vpop.f32.mrf.mxu0
        %v1405 = vadd.f32 %v1340, %v1404
        %1406 = vmatmul.f32.gmra.mxu0 %v690
        %v1407 = vpop.f32.mrf.mxu0
        %v1408 = vadd.f32 %v1343, %v1407
        %1409 = vmatmul.f32.gmra.mxu0 %v692
        %v1410 = vpop.f32.mrf.mxu0
        %v1411 = vadd.f32 %v1346, %v1410
        %1412 = vmatmul.f32.gmra.mxu0 %v694
        %v1413 = vpop.f32.mrf.mxu0
        %v1414 = vadd.f32 %v1349, %v1413
        %1415 = vmatmul.f32.gmra.mxu0 %v696
        %v1416 = vpop.f32.mrf.mxu0
        %v1417 = vadd.f32 %v1352, %v1416
        %1418 = vmatmul.f32.gmra.mxu0 %v698
        %v1419 = vpop.f32.mrf.mxu0
        %v1420 = vadd.f32 %v1355, %v1419
        %1421 = vmatmul.f32.gmra.mxu0 %v700
        %v1422 = vpop.f32.mrf.mxu0
        %v1423 = vadd.f32 %v1358, %v1422
        %1424 = vmatmul.f32.gmra.mxu0 %v1153
        %v1425 = vpop.f32.mrf.mxu0
        %v1426 = vadd.f32 %v1361, %v1425
        %1427 = vmatmul.f32.gmra.mxu0 %v1155
        %v1428 = vpop.f32.mrf.mxu0
        %v1429 = vadd.f32 %v1364, %v1428
        %1430 = vdwg.mxu0
        %1447 = vrot.lane.b32.xlu0 %v1384, 8
        %v1448 = vpop.permute.xlu0 %1447
        %1449 = vrot.lane.b32.xlu0 %v1387, 8
        %v1450 = vpop.permute.xlu0 %1449
        %1451 = vrot.lane.b32.xlu0 %v1390, 8
        %v1452 = vpop.permute.xlu0 %1451
        %1453 = vrot.lane.b32.xlu0 %v1393, 8
        %v1454 = vpop.permute.xlu0 %1453
        %1455 = vrot.lane.b32.xlu0 %v1396, 8
        %v1456 = vpop.permute.xlu0 %1455
        %1457 = vrot.lane.b32.xlu0 %v1399, 8
        %v1458 = vpop.permute.xlu0 %1457
        %1459 = vrot.lane.b32.xlu0 %v1402, 8
        %v1460 = vpop.permute.xlu0 %1459
        %1461 = vrot.lane.b32.xlu0 %v1405, 8
        %v1462 = vpop.permute.xlu0 %1461
        %1463 = vrot.lane.b32.xlu0 %v1408, 8
        %v1464 = vpop.permute.xlu0 %1463
        %1465 = vrot.lane.b32.xlu0 %v1411, 8
        %v1466 = vpop.permute.xlu0 %1465
        %1467 = vrot.lane.b32.xlu0 %v1414, 8
        %v1468 = vpop.permute.xlu0 %1467
        %1469 = vrot.lane.b32.xlu0 %v1417, 8
        %v1470 = vpop.permute.xlu0 %1469
        %1471 = vrot.lane.b32.xlu0 %v1420, 8
        %v1472 = vpop.permute.xlu0 %1471
        %1473 = vrot.lane.b32.xlu0 %v1423, 8
        %v1474 = vpop.permute.xlu0 %1473
        %1475 = vrot.lane.b32.xlu0 %v1426, 8
        %v1476 = vpop.permute.xlu0 %1475
        %1477 = vrot.lane.b32.xlu0 %v1429, 8
        %v1478 = vpop.permute.xlu0 %1477
        %v1495 = vsel %vm516, %v1244, %v1448
        %v1496 = vsel %vm516, %v1247, %v1450
        %v1497 = vsel %vm516, %v1250, %v1452
        %v1498 = vsel %vm516, %v1253, %v1454
        %v1499 = vsel %vm516, %v1256, %v1456
        %v1500 = vsel %vm516, %v1259, %v1458
        %v1501 = vsel %vm516, %v1262, %v1460
        %v1502 = vsel %vm516, %v1265, %v1462
        %v1503 = vsel %vm516, %v1268, %v1464
        %v1504 = vsel %vm516, %v1271, %v1466
        %v1505 = vsel %vm516, %v1274, %v1468
        %v1506 = vsel %vm516, %v1277, %v1470
        %v1507 = vsel %vm516, %v1280, %v1472
        %v1508 = vsel %vm516, %v1283, %v1474
        %v1509 = vsel %vm516, %v1286, %v1476
        %v1510 = vsel %vm516, %v1289, %v1478
        %v1511 = vadd.f32 %v1495, %v1113
        %v1512 = vadd.f32 %v1496, %v1113
        %v1513 = vadd.f32 %v1497, %v1113
        %v1514 = vadd.f32 %v1498, %v1113
        %v1515 = vadd.f32 %v1499, %v1113
        %v1516 = vadd.f32 %v1500, %v1113
        %v1517 = vadd.f32 %v1501, %v1113
        %v1518 = vadd.f32 %v1502, %v1113
        %v1519 = vadd.f32 %v1503, %v1113
        %v1520 = vadd.f32 %v1504, %v1113
        %v1521 = vadd.f32 %v1505, %v1113
        %v1522 = vadd.f32 %v1506, %v1113
        %v1523 = vadd.f32 %v1507, %v1113
        %v1524 = vadd.f32 %v1508, %v1113
        %v1525 = vadd.f32 %v1509, %v1113
        %v1526 = vadd.f32 %v1510, %v1113
        %s1527 = scalar_lea.vmem %s329, 16 [#allocation2]
        %1528 = vst.msk [vmem:[%s1527] sm:$0xff] %vm669, %v1511
        %1529 = vst.msk [vmem:[%s1527 + $0x8] sm:$0xff] %vm669, %v1512
        %1530 = vst.msk [vmem:[%s1527 + $0x20] sm:$0xff] %vm669, %v1513
        %1531 = vst.msk [vmem:[%s1527 + $0x28] sm:$0xff] %vm669, %v1514
        %1532 = vst.msk [vmem:[%s1527 + $0x40] sm:$0xff] %vm669, %v1515
        %1533 = vst.msk [vmem:[%s1527 + $0x48] sm:$0xff] %vm669, %v1516
        %1534 = vst.msk [vmem:[%s1527 + $0x60] sm:$0xff] %vm669, %v1517
        %1535 = vst.msk [vmem:[%s1527 + $0x68] sm:$0xff] %vm669, %v1518
        %1536 = vst.msk [vmem:[%s1527 + $0x80] sm:$0xff] %vm669, %v1519
        %1537 = vst.msk [vmem:[%s1527 + $0x88] sm:$0xff] %vm669, %v1520
        %1538 = vst.msk [vmem:[%s1527 + $0xa0] sm:$0xff] %vm669, %v1521
        %1539 = vst.msk [vmem:[%s1527 + $0xa8] sm:$0xff] %vm669, %v1522
        %1540 = vst.msk [vmem:[%s1527 + $0xc0] sm:$0xff] %vm669, %v1523
        %1541 = vst.msk [vmem:[%s1527 + $0xc8] sm:$0xff] %vm669, %v1524
        %1542 = vst.msk [vmem:[%s1527 + $0xe0] sm:$0xff] %vm669, %v1525
        %1543 = vst.msk [vmem:[%s1527 + $0xe8] sm:$0xff] %vm669, %v1526
        %s1544 = sand.u32 %s175, 1
        %s1545 = scalar_lea.sflag [#allocation3], %s1544
        %s1546 = sand.u32 %s175, 1
        %s1547 = smul.addr %s1546, 256
        %s1548 = scalar_lea.vmem [#allocation2], %s1547
        // Predicated region
        $region41: #{tpu_custom_call.1} parent=39 // pred_check
          %p1549 = pneg %p185
        $region42: #{tpu_custom_call.1} parent=39 // pred_check_branch
          %1551 = sbr.rel (%p1549) target = $region44
        $region43: #{tpu_custom_call.1} parent=39 // pred_region
          %s1552 = smul.u32 8, %s24
          %1554 = vsyncadd %s1545, 0
          %s1555 = smul.addr %s1552, 4
          %s1556 = smul.addr %s23, 64
          %s1557 = sadd.s32 %s1555, %s1556
          %s1558 = smul.addr %s1557, 8
          %s1559 = scalar_lea.hbm %s5, %s1558
          %s1560 = sshll.u32 %s1548, 4
          %s1561 = int_to_ptr.vmem [resolvable:$true] %s1560
          %s1562 = sshll.u32 %s1559, 4
          %s1563 = int_to_ptr.hbm [resolvable:$true] %s1562
          %1568 = dma.vmem_to_hbm [thread:$0]  %s1561, 4096, %s1563, %s1545, 128, 128, 8
        $region44: #{tpu_custom_call.1} parent=39 // pred_fallthru
          _
      $region40: #{tpu_custom_call.1} parent=5 // pred_fallthru
        _
      %p1569 = scmp.le.s32.totalorder 2, %s14
      // Predicated region
      $region45: #{tpu_custom_call.1} parent=5 // pred_check
        %p1570 = pneg %p1569
      $region46: #{tpu_custom_call.1} parent=5 // pred_check_branch
        %1572 = sbr.rel (%p1570) target = $region48
      $region47: #{tpu_custom_call.1} parent=5 // pred_region
        %s1573 = ssub.s32 %s14, 2
        // Predicated region
        $region49: #{tpu_custom_call.1} parent=47 // pred_check
          %p1574 = pneg %p191
        $region50: #{tpu_custom_call.1} parent=47 // pred_check_branch
          %1576 = sbr.rel (%p1574) target = $region52
        $region51: #{tpu_custom_call.1} parent=47 // pred_region
          %s1577 = sand.u32 %s176, 1
          %s1578 = scalar_lea.sflag [#allocation3], %s1577
          %s1579 = sand.u32 %s176, 1
          %s1580 = smul.addr %s1579, 256
          %s1581 = scalar_lea.vmem [#allocation2], %s1580
          %1583 = dma.done %s1578, 4096
        $region52: #{tpu_custom_call.1} parent=47 // pred_fallthru
          _
      $region48: #{tpu_custom_call.1} parent=5 // pred_fallthru
        _
    $region6: #{tpu_custom_call.1} parent=1 // loop_footer
      %s18 = sadd.s32 1, %s14
    $region7: #{tpu_custom_call.1} parent=1 // loop_footer_branch
      %13 = sbr.rel target = $region3
    $region8: #{tpu_custom_call.1} parent=1 // loop_exit
      _
    %1584 = vsyncpa [#allocation3], 1
    %s1585 = scalar_lea.sflag [#allocation3], 1
    %1586 = vsyncpa %s1585, 1

</llo_original>
